<compile_context>
chip_gen: v7x
topology: tpu7x:2x2x1
jax: 0.10.0
libtpu: 0.0.40
codegen_flags: <defaults>
</compile_context>

<pallas_src>
import math

import jax
import jax.numpy as jnp
from jax import lax
from jax.experimental import pallas as pl
from jax.experimental.pallas import tpu as pltpu

D_K = 64
D_V = 64
_SCALE = 1.0 / math.sqrt(D_K)       # plain Python float (not a traced constant)
_NEG_INF = -1000000000.0            # plain Python float (matches masked_fill_ value)


def _sdpa_kernel(q_ref, k_ref, v_ref, mask_ref, ctx_ref, attn_ref,
                 kbf_ref, vbf_ref):
    # Per grid step (b, h, qi):
    #   q_ref    (Lq_t, d_k) f32
    #   k_ref    (Lk,   d_k) f32   -- VMEM-resident across consecutive q-tiles
    #   v_ref    (Lk,   d_v) f32   -- VMEM-resident across consecutive q-tiles
    #   mask_ref (Lq_t, Lk) or (1, Lk) int8, nonzero == masked
    #   ctx_ref  (Lq_t, d_v)
    #   attn_ref (Lq_t, Lk)
    #   kbf_ref  (Lk, d_k) bf16 scratch, vbf_ref (Lk, d_v) bf16 scratch
    qi = pl.program_id(2)

    # Cast K/V to bf16 once per (b, h) head instead of once per q-tile.
    @pl.when(qi == 0)
    def _():
        kbf_ref[...] = k_ref[...].astype(jnp.bfloat16)
        vbf_ref[...] = v_ref[...].astype(jnp.bfloat16)

    # Scale Q once in f32 (Lq_t*d_k muls instead of Lq_t*Lk), feed the MXU bf16.
    q = (q_ref[...] * _SCALE).astype(jnp.bfloat16)

    # scores = Q @ K^T without materializing K^T: contract over the d_k axis.
    scores = lax.dot_general(
        q, kbf_ref[...],
        dimension_numbers=(((1,), (1,)), ((), ())),
        preferred_element_type=jnp.float32,
    )

    # masked_fill_(attn_mask, -1e9) — integer-domain compare, broadcasts for
    # both the dense (Lq_t, Lk) and the key-padding (1, Lk) mask layouts.
    scores = jnp.where(mask_ref[...] != 0, _NEG_INF, scores)

    # Numerically stable softmax; exact normalization (attn is user-visible).
    m = jnp.max(scores, axis=-1, keepdims=True)
    e = jnp.exp(scores - m)
    denom = jnp.sum(e, axis=-1, keepdims=True)
    attn = e / denom

    # context = attn @ V (bf16 MXU feed, f32 accumulation).
    ctx = lax.dot_general(
        attn.astype(jnp.bfloat16), vbf_ref[...],
        dimension_numbers=(((1,), (0,)), ((), ())),
        preferred_element_type=jnp.float32,
    )

    attn_ref[...] = attn.astype(attn_ref.dtype)
    ctx_ref[...] = ctx.astype(ctx_ref.dtype)


def _vmem_bytes_estimate(lq_t, lk, attn_bytes, mask_rows):
    """Per-step VMEM working set (double-buffered pipelined blocks + scratch)."""
    buf = 2  # Pallas double-buffers pipelined inputs/outputs by default
    q = lq_t * D_K * 4 * buf
    k = lk * D_K * 4 * buf
    v = lk * D_V * 4 * buf
    kv_bf16 = lk * (D_K + D_V) * 2          # scratch, single copy
    mask = mask_rows * lk * 1 * buf
    attn = lq_t * lk * attn_bytes * buf
    ctx = lq_t * D_V * 4 * buf
    return q + k + v + kv_bf16 + mask + attn + ctx


def _pick_q_tile(lk, attn_bytes, dense_mask):
    """Largest q-tile whose working set fits a v7x-safe VMEM budget."""
    budget = 40 << 20  # conservative: leaves headroom inside v7x's 64 MiB VMEM
    for t in (256, 128, 64, 32, 16, 8):
        mask_rows = t if dense_mask else 1
        est = _vmem_bytes_estimate(t, lk, attn_bytes, mask_rows)
        # 256-row tiles only when VMEM is comfortably available (v5e/v6e-style
        # budgets); 128 is the v7x-safe default.
        if est <= budget and (t <= 128 or est <= budget // 2):
            return t, est
    return 8, _vmem_bytes_estimate(8, lk, attn_bytes, 8 if dense_mask else 1)


def scaled_dot_product_attention(Q, K, V, attn_mask, *, attn_dtype=jnp.float32):
    """Q:[B,H,Lq,d_k], K:[B,H,Lk,d_k], V:[B,H,Lk,d_v].

    attn_mask: dense [B,H,Lq,Lk] OR key-padding [B,Lk] / [B,1,1,Lk]
               (bool/int; nonzero == masked).
    attn_dtype: jnp.float32 (module-exact, default) or jnp.bfloat16 (halves the
                dominant Lq*Lk HBM writeback — recommended when tolerable).
    """
    B, H, Lq, dk = Q.shape
    Lk = K.shape[2]
    dv = V.shape[3]
    assert dk == D_K and dv == D_V

    attn_bytes = jnp.dtype(attn_dtype).itemsize

    # --- mask normalization --------------------------------------------------
    # Dense masks are streamed per q-tile; key-padding masks stay O(B*Lk) and
    # are broadcast inside the kernel (removes ~18% of HBM traffic).
    if attn_mask.ndim == 2:
        mask = attn_mask.reshape(B, 1, Lk)
        dense_mask = False
    elif attn_mask.ndim == 4 and attn_mask.shape[1] == 1 and attn_mask.shape[2] == 1:
        mask = attn_mask.reshape(B, 1, Lk)
        dense_mask = False
    else:
        assert attn_mask.shape == (B, H, Lq, Lk)
        mask = attn_mask
        dense_mask = True
    if mask.dtype not in (jnp.int8, jnp.uint8):
        # bool -> int8 is a 1-byte-to-1-byte cast (usually fused/elided); wider
        # masks should ideally arrive as int8/bool upstream.
        mask = mask.astype(jnp.int8)

    lq_t, vmem_est = _pick_q_tile(Lk, attn_bytes, dense_mask)

    # Pad Lq to a multiple of the q-tile (no full-Lq fallback; keeps the VMEM
    # working set bounded on every generation).  Padded rows are zero/unmasked
    # and sliced off afterwards.
    pad = (-Lq) % lq_t
    Lqp = Lq + pad
    if pad:
        Q = jnp.pad(Q, ((0, 0), (0, 0), (0, pad), (0, 0)))
        if dense_mask:
            mask = jnp.pad(mask, ((0, 0), (0, 0), (0, pad), (0, 0)))

    grid = (B, H, Lqp // lq_t)

    # K/V index maps ignore the q-tile index -> blocks stay VMEM-resident
    # across consecutive q-tile steps (Pallas skips the DMA when indices repeat).
    q_spec = pl.BlockSpec((None, None, lq_t, dk), lambda b, h, qi: (b, h, qi, 0))
    k_spec = pl.BlockSpec((None, None, Lk, dk), lambda b, h, qi: (b, h, 0, 0))
    v_spec = pl.BlockSpec((None, None, Lk, dv), lambda b, h, qi: (b, h, 0, 0))
    if dense_mask:
        m_spec = pl.BlockSpec((None, None, lq_t, Lk), lambda b, h, qi: (b, h, qi, 0))
    else:
        m_spec = pl.BlockSpec((None, 1, Lk), lambda b, h, qi: (b, 0, 0))
    ctx_spec = pl.BlockSpec((None, None, lq_t, dv), lambda b, h, qi: (b, h, qi, 0))
    attn_spec = pl.BlockSpec((None, None, lq_t, Lk), lambda b, h, qi: (b, h, qi, 0))

    # Derived, generation-aware VMEM limit: estimate + headroom, clamped.
    vmem_limit = int(min(max(vmem_est * 5 // 4 + (8 << 20), 32 << 20), 100 << 20))

    # Advisory cost so XLA schedules surrounding ops around this mem-bound call.
    flops = 4 * B * H * Lqp * Lk * D_K
    bytes_accessed = (
        B * H * Lqp * dk * 4 + B * H * Lk * dk * 4 + B * H * Lk * dv * 4
        + int(mask.size) + B * H * Lqp * Lk * attn_bytes + B * H * Lqp * dv * 4)

    ctx, attn = pl.pallas_call(
        _sdpa_kernel,
        grid=grid,
        in_specs=[q_spec, k_spec, v_spec, m_spec],
        out_specs=(ctx_spec, attn_spec),
        out_shape=(
            jax.ShapeDtypeStruct((B, H, Lqp, dv), jnp.float32),
            jax.ShapeDtypeStruct((B, H, Lqp, Lk), attn_dtype),
        ),
        scratch_shapes=[
            pltpu.VMEM((Lk, D_K), jnp.bfloat16),   # cached bf16 K
            pltpu.VMEM((Lk, D_V), jnp.bfloat16),   # cached bf16 V
        ],
        compiler_params=pltpu.CompilerParams(
            # qi stays "arbitrary": the qi==0 scratch fill requires each core
            # to iterate q-tiles of a (b, h) head from 0 sequentially.
            dimension_semantics=("parallel", "parallel", "arbitrary"),
            vmem_limit_bytes=vmem_limit,
        ),
        cost_estimate=pl.CostEstimate(
            flops=flops,
            transcendentals=B * H * Lqp * Lk,
            bytes_accessed=bytes_accessed,
        ),
    )(Q, K, V, mask)

    if pad:
        ctx = ctx[:, :, :Lq, :]
        attn = attn[:, :, :Lq, :]
    return ctx, attn


def _reference(Q, K, V, attn_mask):
    scores = jnp.einsum("bhqd,bhkd->bhqk", Q, K) / math.sqrt(D_K)
    scores = jnp.where(attn_mask, -1000000000.0, scores)
    attn = jax.nn.softmax(scores, axis=-1)
    ctx = jnp.einsum("bhqk,bhkd->bhqd", attn, V)
    return ctx, attn


if __name__ == "__main__":
    key = jax.random.PRNGKey(0)
    kq, kk, kv, km = jax.random.split(key, 4)

    # Module-shaped test: dense [B,H,Lq,Lk] mask, f32 attn (exact semantics).
    B, H, L = 2, 4, 256
    Q = jax.random.normal(kq, (B, H, L, D_K), dtype=jnp.float32)
    K = jax.random.normal(kk, (B, H, L, D_K), dtype=jnp.float32)
    V = jax.random.normal(kv, (B, H, L, D_V), dtype=jnp.float32)
    attn_mask = jax.random.bernoulli(km, p=0.2, shape=(B, H, L, L))

    ctx, attn = scaled_dot_product_attention(Q, K, V, attn_mask)
    jax.block_until_ready((ctx, attn))

    ctx_ref, attn_ref = _reference(Q, K, V, attn_mask)
    # bf16 MXU feeds -> slightly looser tolerances than pure f32.
    assert jnp.allclose(ctx, ctx_ref, atol=3e-2, rtol=3e-2), float(
        jnp.max(jnp.abs(ctx - ctx_ref)))
    assert jnp.allclose(attn, attn_ref, atol=2e-2, rtol=2e-2), float(
        jnp.max(jnp.abs(attn - attn_ref)))
    # Exact normalization: rows sum to 1 to f32 precision.
    assert jnp.allclose(jnp.sum(attn, axis=-1), 1.0, atol=2e-3)

    # Perf-config test: key-padding mask ([B, Lk]) + bf16 attn writeback,
    # with an Lq that exercises the q-tile padding path.
    Lq2 = 200
    Q2 = jax.random.normal(kq, (B, H, Lq2, D_K), dtype=jnp.float32)
    pad_mask = jax.random.bernoulli(km, p=0.15, shape=(B, L))
    ctx2, attn2 = scaled_dot_product_attention(
        Q2, K, V, pad_mask, attn_dtype=jnp.bfloat16)
    jax.block_until_ready((ctx2, attn2))

    dense2 = jnp.broadcast_to(pad_mask[:, None, None, :], (B, H, Lq2, L))
    ctx2_ref, attn2_ref = _reference(Q2, K, V, dense2)
    assert jnp.allclose(ctx2, ctx2_ref, atol=5e-2, rtol=5e-2), float(
        jnp.max(jnp.abs(ctx2 - ctx2_ref)))
    assert jnp.allclose(attn2.astype(jnp.float32), attn2_ref, atol=3e-2, rtol=3e-2)

    print("KERNEL_OK")
</pallas_src>

<mosaic_0001>
module attributes {stable_mosaic.version = 11 : i64} {
  func.func @_sdpa_kernel(%arg0: i32, %arg1: i32, %arg2: i32, %arg3: memref<1x1x256x64xf32, #tpu.memory_space<vmem>>, %arg4: memref<1x1x256x64xf32, #tpu.memory_space<vmem>>, %arg5: memref<1x1x256x64xf32, #tpu.memory_space<vmem>>, %arg6: memref<1x1x256x256xi8, #tpu.memory_space<vmem>>, %arg7: memref<1x1x256x64xf32, #tpu.memory_space<vmem>>, %arg8: memref<1x1x256x256xf32, #tpu.memory_space<vmem>>, %arg9: memref<256x64xbf16, #tpu.memory_space<vmem>>, %arg10: memref<256x64xbf16, #tpu.memory_space<vmem>>) attributes {dimension_semantics = [#tpu.dimension_semantics<parallel>, #tpu.dimension_semantics<parallel>, #tpu.dimension_semantics<arbitrary>], iteration_bounds = array<i64: 2, 4, 1>, scalar_prefetch = 0 : i64, scratch_operands = 2 : i64, tpu.core_type = #tpu.core_type<tc>, window_params = [{transform_indices = @transform_0, window_bounds = array<i64: 1, 1, 256, 64>}, {transform_indices = @transform_1, window_bounds = array<i64: 1, 1, 256, 64>}, {transform_indices = @transform_2, window_bounds = array<i64: 1, 1, 256, 64>}, {transform_indices = @transform_3, window_bounds = array<i64: 1, 1, 256, 256>}, {transform_indices = @transform_4, window_bounds = array<i64: 1, 1, 256, 64>}, {transform_indices = @transform_5, window_bounds = array<i64: 1, 1, 256, 256>}]} {
    %c0_i32 = arith.constant 0 : i32
    %0 = arith.cmpi eq, %arg2, %c0_i32 : i32
    %1 = arith.extui %0 : i1 to i32
    %c0_i32_0 = arith.constant 0 : i32
    %2 = arith.cmpi ne, %1, %c0_i32_0 : i32
    scf.if %2 {
      %c0_25 = arith.constant 0 : index
      %c0_26 = arith.constant 0 : index
      %c0_27 = arith.constant 0 : index
      %c0_28 = arith.constant 0 : index
      %34 = vector.load %arg4[%c0_25, %c0_26, %c0_27, %c0_28] : memref<1x1x256x64xf32, #tpu.memory_space<vmem>>, vector<1x1x256x64xf32>
      %35 = vector.shape_cast %34 : vector<1x1x256x64xf32> to vector<256x64xf32>
      %36 = arith.truncf %35 : vector<256x64xf32> to vector<256x64xbf16>
      %c0_29 = arith.constant 0 : index
      %c0_30 = arith.constant 0 : index
      %37 = vector.load %arg9[%c0_29, %c0_30] : memref<256x64xbf16, #tpu.memory_space<vmem>>, vector<256x64xbf16>
      tpu.vector_store %arg9[%c0_29, %c0_30], %36 {strides = array<i32>} : memref<256x64xbf16, #tpu.memory_space<vmem>>, vector<256x64xbf16>,
      %c0_31 = arith.constant 0 : index
      %c0_32 = arith.constant 0 : index
      %c0_33 = arith.constant 0 : index
      %c0_34 = arith.constant 0 : index
      %38 = vector.load %arg5[%c0_31, %c0_32, %c0_33, %c0_34] : memref<1x1x256x64xf32, #tpu.memory_space<vmem>>, vector<1x1x256x64xf32>
      %39 = vector.shape_cast %38 : vector<1x1x256x64xf32> to vector<256x64xf32>
      %40 = arith.truncf %39 : vector<256x64xf32> to vector<256x64xbf16>
      %c0_35 = arith.constant 0 : index
      %c0_36 = arith.constant 0 : index
      %41 = vector.load %arg10[%c0_35, %c0_36] : memref<256x64xbf16, #tpu.memory_space<vmem>>, vector<256x64xbf16>
      tpu.vector_store %arg10[%c0_35, %c0_36], %40 {strides = array<i32>} : memref<256x64xbf16, #tpu.memory_space<vmem>>, vector<256x64xbf16>,
    } else {
    }
    %c0 = arith.constant 0 : index
    %c0_1 = arith.constant 0 : index
    %c0_2 = arith.constant 0 : index
    %c0_3 = arith.constant 0 : index
    %3 = vector.load %arg3[%c0, %c0_1, %c0_2, %c0_3] : memref<1x1x256x64xf32, #tpu.memory_space<vmem>>, vector<1x1x256x64xf32>
    %4 = vector.shape_cast %3 : vector<1x1x256x64xf32> to vector<256x64xf32>
    %cst = arith.constant 1.250000e-01 : f32
    %5 = vector.broadcast %cst : f32 to vector<256x64xf32>
    %6 = arith.mulf %4, %5 : vector<256x64xf32>
    %7 = arith.truncf %6 : vector<256x64xf32> to vector<256x64xbf16>
    %c0_4 = arith.constant 0 : index
    %c0_5 = arith.constant 0 : index
    %8 = vector.load %arg9[%c0_4, %c0_5] : memref<256x64xbf16, #tpu.memory_space<vmem>>, vector<256x64xbf16>
    %cst_6 = arith.constant dense<0.000000e+00> : vector<256x256xf32>
    %9 = tpu.matmul %7, %8, %cst_6 {dimension_numbers = #tpu.dot_dimension_numbers<[1], [1], [0], [0], [0, 0, 1, 0], [], []>} : vector<256x64xbf16>, vector<256x64xbf16>, vector<256x256xf32> -> vector<256x256xf32>
    %c0_7 = arith.constant 0 : index
    %c0_8 = arith.constant 0 : index
    %c0_9 = arith.constant 0 : index
    %c0_10 = arith.constant 0 : index
    %10 = vector.load %arg6[%c0_7, %c0_8, %c0_9, %c0_10] : memref<1x1x256x256xi8, #tpu.memory_space<vmem>>, vector<1x1x256x256xi8>
    %11 = vector.shape_cast %10 : vector<1x1x256x256xi8> to vector<256x256xi8>
    %c0_i8 = arith.constant 0 : i8
    %12 = vector.broadcast %c0_i8 : i8 to vector<256x256xi8>
    %13 = arith.cmpi ne, %11, %12 : vector<256x256xi8>
    %cst_11 = arith.constant -1.000000e+09 : f32
    %14 = vector.broadcast %cst_11 : f32 to vector<256x256xf32>
    %15 = arith.select %13, %14, %9 : vector<256x256xi1>, vector<256x256xf32>
    %cst_12 = arith.constant dense<0xFF800000> : vector<256xf32>
    %16 = vector.multi_reduction <maximumf>, %15, %cst_12 [1] : vector<256x256xf32> to vector<256xf32>
    %17 = vector.shape_cast %16 : vector<256xf32> to vector<256x1xf32>
    %18 = vector.broadcast %17 : vector<256x1xf32> to vector<256x256xf32>
    %19 = arith.subf %15, %18 : vector<256x256xf32>
    %20 = math.exp %19 : vector<256x256xf32>
    %cst_13 = arith.constant dense<0.000000e+00> : vector<256xf32>
    %21 = vector.multi_reduction <add>, %20, %cst_13 [1] : vector<256x256xf32> to vector<256xf32>
    %22 = vector.shape_cast %21 : vector<256xf32> to vector<256x1xf32>
    %23 = vector.broadcast %22 : vector<256x1xf32> to vector<256x256xf32>
    %24 = arith.divf %20, %23 : vector<256x256xf32>
    %25 = arith.truncf %24 : vector<256x256xf32> to vector<256x256xbf16>
    %c0_14 = arith.constant 0 : index
    %c0_15 = arith.constant 0 : index
    %26 = vector.load %arg10[%c0_14, %c0_15] : memref<256x64xbf16, #tpu.memory_space<vmem>>, vector<256x64xbf16>
    %cst_16 = arith.constant dense<0.000000e+00> : vector<256x64xf32>
    %27 = tpu.matmul %25, %26, %cst_16 {dimension_numbers = #tpu.dot_dimension_numbers<[1], [0], [0], [1], [0, 0, 1, 1], [], []>} : vector<256x256xbf16>, vector<256x64xbf16>, vector<256x64xf32> -> vector<256x64xf32>
    %c0_17 = arith.constant 0 : index
    %c0_18 = arith.constant 0 : index
    %c0_19 = arith.constant 0 : index
    %c0_20 = arith.constant 0 : index
    %28 = vector.load %arg8[%c0_17, %c0_18, %c0_19, %c0_20] : memref<1x1x256x256xf32, #tpu.memory_space<vmem>>, vector<1x1x256x256xf32>
    %29 = vector.shape_cast %28 : vector<1x1x256x256xf32> to vector<256x256xf32>
    %30 = vector.shape_cast %24 : vector<256x256xf32> to vector<1x1x256x256xf32>
    tpu.vector_store %arg8[%c0_17, %c0_18, %c0_19, %c0_20], %30 {strides = array<i32>} : memref<1x1x256x256xf32, #tpu.memory_space<vmem>>, vector<1x1x256x256xf32>,
    %c0_21 = arith.constant 0 : index
    %c0_22 = arith.constant 0 : index
    %c0_23 = arith.constant 0 : index
    %c0_24 = arith.constant 0 : index
    %31 = vector.load %arg7[%c0_21, %c0_22, %c0_23, %c0_24] : memref<1x1x256x64xf32, #tpu.memory_space<vmem>>, vector<1x1x256x64xf32>
    %32 = vector.shape_cast %31 : vector<1x1x256x64xf32> to vector<256x64xf32>
    %33 = vector.shape_cast %27 : vector<256x64xf32> to vector<1x1x256x64xf32>
    tpu.vector_store %arg7[%c0_21, %c0_22, %c0_23, %c0_24], %33 {strides = array<i32>} : memref<1x1x256x64xf32, #tpu.memory_space<vmem>>, vector<1x1x256x64xf32>,
    return
  }
  func.func @transform_0(%arg0: i32, %arg1: i32, %arg2: i32) -> (i32, i32, i32, i32) {
    %c0_i32 = arith.constant 0 : i32
    %c0_i32_0 = arith.constant 0 : i32
    return %arg0, %arg1, %arg2, %c0_i32 : i32, i32, i32, i32
  }
  func.func @transform_1(%arg0: i32, %arg1: i32, %arg2: i32) -> (i32, i32, i32, i32) {
    %c0_i32 = arith.constant 0 : i32
    %c0_i32_0 = arith.constant 0 : i32
    %c0_i32_1 = arith.constant 0 : i32
    return %arg0, %arg1, %c0_i32, %c0_i32_0 : i32, i32, i32, i32
  }
  func.func @transform_2(%arg0: i32, %arg1: i32, %arg2: i32) -> (i32, i32, i32, i32) {
    %c0_i32 = arith.constant 0 : i32
    %c0_i32_0 = arith.constant 0 : i32
    %c0_i32_1 = arith.constant 0 : i32
    return %arg0, %arg1, %c0_i32, %c0_i32_0 : i32, i32, i32, i32
  }
  func.func @transform_3(%arg0: i32, %arg1: i32, %arg2: i32) -> (i32, i32, i32, i32) {
    %c0_i32 = arith.constant 0 : i32
    %c0_i32_0 = arith.constant 0 : i32
    return %arg0, %arg1, %arg2, %c0_i32 : i32, i32, i32, i32
  }
  func.func @transform_4(%arg0: i32, %arg1: i32, %arg2: i32) -> (i32, i32, i32, i32) {
    %c0_i32 = arith.constant 0 : i32
    %c0_i32_0 = arith.constant 0 : i32
    return %arg0, %arg1, %arg2, %c0_i32 : i32, i32, i32, i32
  }
  func.func @transform_5(%arg0: i32, %arg1: i32, %arg2: i32) -> (i32, i32, i32, i32) {
    %c0_i32 = arith.constant 0 : i32
    %c0_i32_0 = arith.constant 0 : i32
    return %arg0, %arg1, %arg2, %c0_i32 : i32, i32, i32, i32
  }
}

</mosaic_0001>

<llo_original>
// kernel: tpu_custom_call.1
$region0: #{tpu_custom_call.1}
  #allocation0 [shape = 'u32[]', space=smem, size = 0x4, offset = 0x4, fixed_abs, tag = 'smem constant byte address 0x4 - core index']
  #allocation1 [shape = 'u32[144,128]{1,0:T(1,128)}', space=vmem, size = 0x12000, scoped, tag = 'internal scratch']
  #allocation2 [shape = 'bf16[256,64]{1,0:T(16,128)(2,1)}', space=vmem, size = 0x10000, scoped, tag = 'scratch operand']
  #allocation3 [shape = 'bf16[256,64]{1,0:T(16,128)(2,1)}', space=vmem, size = 0x10000, scoped, tag = 'scratch operand']
  %s0 = inlined_call_operand.vmem [shape: f32[2,4,256,64], index: 0, kind: input, shape index: {}]
  %s1 = inlined_call_operand.vmem [shape: f32[2,4,256,64], index: 1, kind: input, shape index: {}]
  %s2 = inlined_call_operand.vmem [shape: f32[2,4,256,64], index: 2, kind: input, shape index: {}]
  %s3 = inlined_call_operand.vmem [shape: s8[2,4,256,256], index: 3, kind: input, shape index: {}]
  %s4 = inlined_call_operand.vmem [shape: f32[2,4,256,64], index: 4, kind: output, shape index: {0}]
  %s5 = inlined_call_operand.hbm [shape: f32[2,4,256,256], index: 5, kind: output, shape index: {1}]
  %6 = xla_tuple %s4, %s5
  %s7 = sld [smem:[#allocation0]]
  $region61: #{tpu_custom_call.1} parent=0
    _
  %s9 = ssub.s32 1, %s7
  %s10 = scalar_select 0, %s9, %s7
  $region1: #{tpu_custom_call.1} parent=0
    #allocation4 [shape = 'u8[524288]{0}', space=vmem, size = 0x80000, scoped, tag = 'output window, operand 1']
    #allocation5 [shape = 's32[2]{0}', space=sflag, size = 0x8, scoped, tag = 'scoped memory for tpu_custom_call.1']
    %11 = vsyncpa [#allocation5], 0
    %s12 = scalar_lea.sflag [#allocation5], 1
    %13 = vsyncpa %s12, 0
    loop: start=0, step=1, limit=10
    $region2: #{tpu_custom_call.1} parent=1 // loop_pre_header
      _
    $region3: #{tpu_custom_call.1} parent=1 // loop_header
      %s15 = sphi 0, %s19
      %p16 = scmp.ge.s32.totalorder %s15, 10
      %s22 = sphi 0, %s41
      %s23 = sphi 0, %s37
      %s24 = sphi 0, %s33
      %s25 = sphi 0, %s22
      %s26 = sphi 0, %s23
      %s27 = sphi 0, %s24
      %s28 = sphi 0, %s25
      %s29 = sphi 0, %s26
      %s30 = sphi 0, %s27
      %s48 = sphi 0, %s50
      %s51 = sphi 0, %s48
      %s52 = sphi 0, %s51
      %s68 = sphi 0, %s52
      %s76 = sphi 0, %s78
      %s79 = sphi 0, %s76
      %s80 = sphi 0, %s79
      %s96 = sphi 0, %s80
      %s104 = sphi 0, %s106
      %s107 = sphi 0, %s104
      %s108 = sphi 0, %s107
      %s124 = sphi 0, %s108
      %s134 = sphi 0, %s136
      %s137 = sphi 0, %s134
      %s138 = sphi 0, %s137
      %s154 = sphi 0, %s138
      %s164 = sphi 0, %s166
      %s167 = sphi 0, %s164
      %s168 = sphi 0, %s167
      %s184 = sphi 0, %s168
      %s194 = sphi 0, %s196
      %s197 = sphi 0, %s194
      %s198 = sphi 0, %s197
      %s214 = sphi 0, %s198
    $region4: #{tpu_custom_call.1} parent=1 // loop_header_branch
      %18 = sbr.rel (%p16) target = $region8
    $region5: #{tpu_custom_call.1} parent=1 // loop_body
      %s20 = ssub.s32 %s15, 1
      %s21 = ssub.s32 %s15, 2
      %s31 = sadd.s32 1, %s24
      %p32 = scmp.ge.s32.totalorder %s31, 1
      %s33 = scalar_select %p32, 0, %s31
      %s34 = sadd.s32 1, %s23
      %s35 = scalar_select %p32, %s34, %s23
      %p36 = scmp.ge.s32.totalorder %s35, 4
      %s37 = scalar_select %p36, 0, %s35
      %s38 = sadd.s32 1, %s22
      %s39 = scalar_select %p36, %s38, %s22
      %p40 = scmp.ge.s32.totalorder %s39, 2
      %s41 = scalar_select %p40, 0, %s39
      %s42 = ssub.s32 %s22, %s41
      %s43 = ssub.s32 %s23, %s37
      %s44 = sor.u32 %s42, %s43
      %s45 = ssub.s32 %s24, %s33
      %s46 = sor.u32 %s44, %s45
      %p47 = scmp.eq.s32.totalorder %s46, 0
      %s49 = sadd.s32 %s48, 1
      %s50 = scalar_select %p47, %s48, %s49
      %p53 = pneg %p47
      %p54 = scmp.eq.s32.totalorder %s15, 7
      %p55 = por %p53, %p54
      %p56 = scmp.ne.s32.totalorder %s48, %s51
      %p57 = scmp.eq.s32.totalorder %s15, 0
      %p58 = por %p56, %p57
      %p59 = scmp.ne.s32.totalorder %s48, %s51
      %p60 = scmp.eq.s32.totalorder %s20, 7
      %p61 = por %p59, %p60
      %p62 = scmp.ne.s32.totalorder %s51, %s52
      %p63 = scmp.eq.s32.totalorder %s20, 0
      %p64 = por %p62, %p63
      %p65 = scmp.ne.s32.totalorder %s51, %s52
      %p66 = scmp.eq.s32.totalorder %s21, 7
      %p67 = por %p65, %p66
      %p69 = scmp.ne.s32.totalorder %s52, %s68
      %p70 = scmp.eq.s32.totalorder %s21, 0
      %p71 = por %p69, %p70
      %s72 = ssub.s32 %s22, %s41
      %s73 = ssub.s32 %s23, %s37
      %s74 = sor.u32 %s72, %s73
      %p75 = scmp.eq.s32.totalorder %s74, 0
      %s77 = sadd.s32 %s76, 1
      %s78 = scalar_select %p75, %s76, %s77
      %p81 = pneg %p75
      %p82 = scmp.eq.s32.totalorder %s15, 7
      %p83 = por %p81, %p82
      %p84 = scmp.ne.s32.totalorder %s76, %s79
      %p85 = scmp.eq.s32.totalorder %s15, 0
      %p86 = por %p84, %p85
      %p87 = scmp.ne.s32.totalorder %s76, %s79
      %p88 = scmp.eq.s32.totalorder %s20, 7
      %p89 = por %p87, %p88
      %p90 = scmp.ne.s32.totalorder %s79, %s80
      %p91 = scmp.eq.s32.totalorder %s20, 0
      %p92 = por %p90, %p91
      %p93 = scmp.ne.s32.totalorder %s79, %s80
      %p94 = scmp.eq.s32.totalorder %s21, 7
      %p95 = por %p93, %p94
      %p97 = scmp.ne.s32.totalorder %s80, %s96
      %p98 = scmp.eq.s32.totalorder %s21, 0
      %p99 = por %p97, %p98
      %s100 = ssub.s32 %s22, %s41
      %s101 = ssub.s32 %s23, %s37
      %s102 = sor.u32 %s100, %s101
      %p103 = scmp.eq.s32.totalorder %s102, 0
      %s105 = sadd.s32 %s104, 1
      %s106 = scalar_select %p103, %s104, %s105
      %p109 = pneg %p103
      %p110 = scmp.eq.s32.totalorder %s15, 7
      %p111 = por %p109, %p110
      %p112 = scmp.ne.s32.totalorder %s104, %s107
      %p113 = scmp.eq.s32.totalorder %s15, 0
      %p114 = por %p112, %p113
      %p115 = scmp.ne.s32.totalorder %s104, %s107
      %p116 = scmp.eq.s32.totalorder %s20, 7
      %p117 = por %p115, %p116
      %p118 = scmp.ne.s32.totalorder %s107, %s108
      %p119 = scmp.eq.s32.totalorder %s20, 0
      %p120 = por %p118, %p119
      %p121 = scmp.ne.s32.totalorder %s107, %s108
      %p122 = scmp.eq.s32.totalorder %s21, 7
      %p123 = por %p121, %p122
      %p125 = scmp.ne.s32.totalorder %s108, %s124
      %p126 = scmp.eq.s32.totalorder %s21, 0
      %p127 = por %p125, %p126
      %s128 = ssub.s32 %s22, %s41
      %s129 = ssub.s32 %s23, %s37
      %s130 = sor.u32 %s128, %s129
      %s131 = ssub.s32 %s24, %s33
      %s132 = sor.u32 %s130, %s131
      %p133 = scmp.eq.s32.totalorder %s132, 0
      %s135 = sadd.s32 %s134, 1
      %s136 = scalar_select %p133, %s134, %s135
      %p139 = pneg %p133
      %p140 = scmp.eq.s32.totalorder %s15, 7
      %p141 = por %p139, %p140
      %p142 = scmp.ne.s32.totalorder %s134, %s137
      %p143 = scmp.eq.s32.totalorder %s15, 0
      %p144 = por %p142, %p143
      %p145 = scmp.ne.s32.totalorder %s134, %s137
      %p146 = scmp.eq.s32.totalorder %s20, 7
      %p147 = por %p145, %p146
      %p148 = scmp.ne.s32.totalorder %s137, %s138
      %p149 = scmp.eq.s32.totalorder %s20, 0
      %p150 = por %p148, %p149
      %p151 = scmp.ne.s32.totalorder %s137, %s138
      %p152 = scmp.eq.s32.totalorder %s21, 7
      %p153 = por %p151, %p152
      %p155 = scmp.ne.s32.totalorder %s138, %s154
      %p156 = scmp.eq.s32.totalorder %s21, 0
      %p157 = por %p155, %p156
      %s158 = ssub.s32 %s22, %s41
      %s159 = ssub.s32 %s23, %s37
      %s160 = sor.u32 %s158, %s159
      %s161 = ssub.s32 %s24, %s33
      %s162 = sor.u32 %s160, %s161
      %p163 = scmp.eq.s32.totalorder %s162, 0
      %s165 = sadd.s32 %s164, 1
      %s166 = scalar_select %p163, %s164, %s165
      %p169 = pneg %p163
      %p170 = scmp.eq.s32.totalorder %s15, 7
      %p171 = por %p169, %p170
      %p172 = scmp.ne.s32.totalorder %s164, %s167
      %p173 = scmp.eq.s32.totalorder %s15, 0
      %p174 = por %p172, %p173
      %p175 = scmp.ne.s32.totalorder %s164, %s167
      %p176 = scmp.eq.s32.totalorder %s20, 7
      %p177 = por %p175, %p176
      %p178 = scmp.ne.s32.totalorder %s167, %s168
      %p179 = scmp.eq.s32.totalorder %s20, 0
      %p180 = por %p178, %p179
      %p181 = scmp.ne.s32.totalorder %s167, %s168
      %p182 = scmp.eq.s32.totalorder %s21, 7
      %p183 = por %p181, %p182
      %p185 = scmp.ne.s32.totalorder %s168, %s184
      %p186 = scmp.eq.s32.totalorder %s21, 0
      %p187 = por %p185, %p186
      %s188 = ssub.s32 %s22, %s41
      %s189 = ssub.s32 %s23, %s37
      %s190 = sor.u32 %s188, %s189
      %s191 = ssub.s32 %s24, %s33
      %s192 = sor.u32 %s190, %s191
      %p193 = scmp.eq.s32.totalorder %s192, 0
      %s195 = sadd.s32 %s194, 1
      %s196 = scalar_select %p193, %s194, %s195
      %p199 = pneg %p193
      %p200 = scmp.eq.s32.totalorder %s15, 7
      %p201 = por %p199, %p200
      %p202 = scmp.ne.s32.totalorder %s194, %s197
      %p203 = scmp.eq.s32.totalorder %s15, 0
      %p204 = por %p202, %p203
      %p205 = scmp.ne.s32.totalorder %s194, %s197
      %p206 = scmp.eq.s32.totalorder %s20, 7
      %p207 = por %p205, %p206
      %p208 = scmp.ne.s32.totalorder %s197, %s198
      %p209 = scmp.eq.s32.totalorder %s20, 0
      %p210 = por %p208, %p209
      %p211 = scmp.ne.s32.totalorder %s197, %s198
      %p212 = scmp.eq.s32.totalorder %s21, 7
      %p213 = por %p211, %p212
      %p215 = scmp.ne.s32.totalorder %s198, %s214
      %p216 = scmp.eq.s32.totalorder %s21, 0
      %p217 = por %p215, %p216
      %p218 = scmp.le.s32.totalorder 1, %s15
      %p219 = scmp.lt.s32.totalorder %s15, 9
      %p220 = pnand %p218, %p219
      %p221 = pneg %p220
      // Predicated region
      $region9: #{tpu_custom_call.1} parent=5 // pred_check
        _
      $region10: #{tpu_custom_call.1} parent=5 // pred_check_branch
        %223 = sbr.rel (%p220) target = $region12
      $region11: #{tpu_custom_call.1} parent=5 // pred_region
        %s224 = ssub.s32 %s15, 1
      $region12: #{tpu_custom_call.1} parent=5 // pred_fallthru
        _
      %p225 = scmp.lt.s32.totalorder %s15, 8
      // Predicated region
      $region13: #{tpu_custom_call.1} parent=5 // pred_check
        %p226 = pneg %p225
      $region14: #{tpu_custom_call.1} parent=5 // pred_check_branch
        %228 = sbr.rel (%p226) target = $region16
      $region15: #{tpu_custom_call.1} parent=5 // pred_region
        // Predicated region
        $region17: #{tpu_custom_call.1} parent=15 // pred_check
          %p229 = pneg %p58
        $region18: #{tpu_custom_call.1} parent=15 // pred_check_branch
          %231 = sbr.rel (%p229) target = $region20
        $region19: #{tpu_custom_call.1} parent=15 // pred_region
          %s232 = smul.u32 32, %s24
          %p233 = scmp.lt.s32.totalorder %s22, 1
          %s234 = scalar_select %p233, %s22, 1
          %p235 = scmp.lt.s32.totalorder %s23, 3
          %s236 = scalar_select %p235, %s23, 3
          %p237 = scmp.lt.s32.totalorder %s232, 31
          %s238 = scalar_select %p237, %s232, 31
          %s239 = smul.addr %s236, 32
          %s240 = sadd.s32 %s238, %s239
          %s241 = smul.addr %s234, 128
          %s242 = sadd.s32 %s240, %s241
          %s243 = smul.addr %s242, 8
          %s244 = scalar_lea.vmem %s0, %s243
          %s245 = smul.u32 32, %s24
        $region20: #{tpu_custom_call.1} parent=15 // pred_fallthru
          _
        // Predicated region
        $region21: #{tpu_custom_call.1} parent=15 // pred_check
          %p246 = pneg %p86
        $region22: #{tpu_custom_call.1} parent=15 // pred_check_branch
          %248 = sbr.rel (%p246) target = $region24
        $region23: #{tpu_custom_call.1} parent=15 // pred_region
          %p249 = scmp.lt.s32.totalorder %s22, 1
          %s250 = scalar_select %p249, %s22, 1
          %p251 = scmp.lt.s32.totalorder %s23, 3
          %s252 = scalar_select %p251, %s23, 3
          %s253 = smul.addr %s252, 32
          %s254 = smul.addr %s250, 128
          %s255 = sadd.s32 %s253, %s254
          %s256 = smul.addr %s255, 8
          %s257 = scalar_lea.vmem %s1, %s256
        $region24: #{tpu_custom_call.1} parent=15 // pred_fallthru
          _
        // Predicated region
        $region25: #{tpu_custom_call.1} parent=15 // pred_check
          %p258 = pneg %p114
        $region26: #{tpu_custom_call.1} parent=15 // pred_check_branch
          %260 = sbr.rel (%p258) target = $region28
        $region27: #{tpu_custom_call.1} parent=15 // pred_region
          %p261 = scmp.lt.s32.totalorder %s22, 1
          %s262 = scalar_select %p261, %s22, 1
          %p263 = scmp.lt.s32.totalorder %s23, 3
          %s264 = scalar_select %p263, %s23, 3
          %s265 = smul.addr %s264, 32
          %s266 = smul.addr %s262, 128
          %s267 = sadd.s32 %s265, %s266
          %s268 = smul.addr %s267, 8
          %s269 = scalar_lea.vmem %s2, %s268
        $region28: #{tpu_custom_call.1} parent=15 // pred_fallthru
          _
        // Predicated region
        $region29: #{tpu_custom_call.1} parent=15 // pred_check
          %p270 = pneg %p144
        $region30: #{tpu_custom_call.1} parent=15 // pred_check_branch
          %272 = sbr.rel (%p270) target = $region32
        $region31: #{tpu_custom_call.1} parent=15 // pred_region
          %s273 = smul.u32 8, %s24
          %p274 = scmp.lt.s32.totalorder %s22, 1
          %s275 = scalar_select %p274, %s22, 1
          %p276 = scmp.lt.s32.totalorder %s23, 3
          %s277 = scalar_select %p276, %s23, 3
          %p278 = scmp.lt.s32.totalorder %s273, 7
          %s279 = scalar_select %p278, %s273, 7
          %s280 = smul.addr %s279, 2
          %s281 = smul.addr %s277, 16
          %s282 = sadd.s32 %s280, %s281
          %s283 = smul.addr %s275, 64
          %s284 = sadd.s32 %s282, %s283
          %s285 = smul.addr %s284, 8
          %s286 = scalar_lea.vmem %s3, %s285
          %s287 = smul.u32 8, %s24
        $region32: #{tpu_custom_call.1} parent=15 // pred_fallthru
          _
      $region16: #{tpu_custom_call.1} parent=5 // pred_fallthru
        _
      %p288 = scmp.le.s32.totalorder 1, %s15
      %p289 = scmp.lt.s32.totalorder %s15, 9
      %p290 = pnand %p288, %p289
      %p291 = pneg %p290
      // Predicated region
      $region33: #{tpu_custom_call.1} parent=5 // pred_check
        _
      $region34: #{tpu_custom_call.1} parent=5 // pred_check_branch
        %293 = sbr.rel (%p290) target = $region36
      $region35: #{tpu_custom_call.1} parent=5 // pred_region
        %s294 = ssub.s32 %s15, 1
        %s295 = smul.u32 32, %s27
        %p296 = scmp.lt.s32.totalorder %s25, 1
        %s297 = scalar_select %p296, %s25, 1
        %p298 = scmp.lt.s32.totalorder %s26, 3
        %s299 = scalar_select %p298, %s26, 3
        %p300 = scmp.lt.s32.totalorder %s295, 31
        %s301 = scalar_select %p300, %s295, 31
        %s302 = smul.addr %s299, 32
        %s303 = sadd.s32 %s301, %s302
        %s304 = smul.addr %s297, 128
        %s305 = sadd.s32 %s303, %s304
        %s306 = smul.addr %s305, 8
        %s307 = scalar_lea.vmem %s0, %s306
        %p308 = pneg %p64
        %p309 = pneg %p61
        %p310 = scmp.lt.s32.totalorder %s25, 1
        %s311 = scalar_select %p310, %s25, 1
        %p312 = scmp.lt.s32.totalorder %s26, 3
        %s313 = scalar_select %p312, %s26, 3
        %s314 = smul.addr %s313, 32
        %s315 = smul.addr %s311, 128
        %s316 = sadd.s32 %s314, %s315
        %s317 = smul.addr %s316, 8
        %s318 = scalar_lea.vmem %s1, %s317
        %p319 = pneg %p92
        %p320 = pneg %p89
        %p321 = scmp.lt.s32.totalorder %s25, 1
        %s322 = scalar_select %p321, %s25, 1
        %p323 = scmp.lt.s32.totalorder %s26, 3
        %s324 = scalar_select %p323, %s26, 3
        %s325 = smul.addr %s324, 32
        %s326 = smul.addr %s322, 128
        %s327 = sadd.s32 %s325, %s326
        %s328 = smul.addr %s327, 8
        %s329 = scalar_lea.vmem %s2, %s328
        %p330 = pneg %p120
        %p331 = pneg %p117
        %s332 = smul.u32 8, %s27
        %p333 = scmp.lt.s32.totalorder %s25, 1
        %s334 = scalar_select %p333, %s25, 1
        %p335 = scmp.lt.s32.totalorder %s26, 3
        %s336 = scalar_select %p335, %s26, 3
        %p337 = scmp.lt.s32.totalorder %s332, 7
        %s338 = scalar_select %p337, %s332, 7
        %s339 = smul.addr %s338, 2
        %s340 = smul.addr %s336, 16
        %s341 = sadd.s32 %s339, %s340
        %s342 = smul.addr %s334, 64
        %s343 = sadd.s32 %s341, %s342
        %s344 = smul.addr %s343, 8
        %s345 = scalar_lea.vmem %s3, %s344
        %p346 = pneg %p150
        %p347 = pneg %p147
        %p348 = pneg %p180
        %p349 = pneg %p177
        %s350 = smul.u32 32, %s27
        %p351 = scmp.lt.s32.totalorder %s25, 1
        %s352 = scalar_select %p351, %s25, 1
        %p353 = scmp.lt.s32.totalorder %s26, 3
        %s354 = scalar_select %p353, %s26, 3
        %p355 = scmp.lt.s32.totalorder %s350, 31
        %s356 = scalar_select %p355, %s350, 31
        %s357 = smul.addr %s354, 32
        %s358 = sadd.s32 %s356, %s357
        %s359 = smul.addr %s352, 128
        %s360 = sadd.s32 %s358, %s359
        %s361 = smul.addr %s360, 8
        %s362 = scalar_lea.vmem %s4, %s361
        %p363 = pneg %p210
        %p364 = pneg %p207
        %s365 = sand.u32 %s197, 1
        %s366 = scalar_lea.sflag [#allocation5], %s365
        %s367 = sand.u32 %s197, 1
        %s368 = smul.addr %s367, 512
        %s369 = scalar_lea.vmem [#allocation4], %s368
        %s370 = smul.u32 32, %s27
        %p371 = scmp.lt.s32.totalorder %s25, 1
        %s372 = scalar_select %p371, %s25, 1
        %p373 = scmp.lt.s32.totalorder %s26, 3
        %s374 = scalar_select %p373, %s26, 3
        %p375 = scmp.lt.s32.totalorder %s370, 31
        %s376 = scalar_select %p375, %s370, 31
        %s377 = smul.addr %s374, 32
        %s378 = sadd.s32 %s376, %s377
        %s379 = smul.addr %s372, 128
        %s380 = sadd.s32 %s378, %s379
        %s381 = smul.addr %s380, 8
        %s382 = scalar_lea.vmem %s0, %s381
        %s383 = smul.u32 32, %s27
        %p384 = scmp.lt.s32.totalorder %s25, 1
        %s385 = scalar_select %p384, %s25, 1
        %p386 = scmp.lt.s32.totalorder %s26, 3
        %s387 = scalar_select %p386, %s26, 3
        %s388 = smul.addr %s387, 32
        %s389 = smul.addr %s385, 128
        %s390 = sadd.s32 %s388, %s389
        %s391 = smul.addr %s390, 8
        %s392 = scalar_lea.vmem %s1, %s391
        %p393 = scmp.lt.s32.totalorder %s25, 1
        %s394 = scalar_select %p393, %s25, 1
        %p395 = scmp.lt.s32.totalorder %s26, 3
        %s396 = scalar_select %p395, %s26, 3
        %s397 = smul.addr %s396, 32
        %s398 = smul.addr %s394, 128
        %s399 = sadd.s32 %s397, %s398
        %s400 = smul.addr %s399, 8
        %s401 = scalar_lea.vmem %s2, %s400
        %s402 = smul.u32 8, %s27
        %p403 = scmp.lt.s32.totalorder %s25, 1
        %s404 = scalar_select %p403, %s25, 1
        %p405 = scmp.lt.s32.totalorder %s26, 3
        %s406 = scalar_select %p405, %s26, 3
        %p407 = scmp.lt.s32.totalorder %s402, 7
        %s408 = scalar_select %p407, %s402, 7
        %s409 = smul.addr %s408, 2
        %s410 = smul.addr %s406, 16
        %s411 = sadd.s32 %s409, %s410
        %s412 = smul.addr %s404, 64
        %s413 = sadd.s32 %s411, %s412
        %s414 = smul.addr %s413, 8
        %s415 = scalar_lea.vmem %s3, %s414
        %s416 = smul.u32 8, %s27
        %s417 = smul.u32 32, %s27
        %p418 = scmp.lt.s32.totalorder %s25, 1
        %s419 = scalar_select %p418, %s25, 1
        %p420 = scmp.lt.s32.totalorder %s26, 3
        %s421 = scalar_select %p420, %s26, 3
        %p422 = scmp.lt.s32.totalorder %s417, 31
        %s423 = scalar_select %p422, %s417, 31
        %s424 = smul.addr %s421, 32
        %s425 = sadd.s32 %s423, %s424
        %s426 = smul.addr %s419, 128
        %s427 = sadd.s32 %s425, %s426
        %s428 = smul.addr %s427, 8
        %s429 = scalar_lea.vmem %s4, %s428
        %s430 = smul.u32 32, %s27
        %s431 = smul.u32 32, %s27
        %p435 = scmp.eq.s32.totalorder %s27, 0
        // Predicated region
        $region37: #{tpu_custom_call.1} parent=35 // pred_check
          %p436 = pneg %p435
        $region38: #{tpu_custom_call.1} parent=35 // pred_check_branch
          %438 = sbr.rel (%p436) target = $region40
        $region39: #{tpu_custom_call.1} parent=35 // pred_region
          %v439 = vld [vmem:[%s392] sm:$0xff]
          %v440 = vld [vmem:[%s392 + $0x8] sm:$0xff]
          %v441 = vld [vmem:[%s392 + $0x10] sm:$0xff]
          %v442 = vld [vmem:[%s392 + $0x18] sm:$0xff]
          %v443 = vld [vmem:[%s392 + $0x20] sm:$0xff]
          %v444 = vld [vmem:[%s392 + $0x28] sm:$0xff]
          %v445 = vld [vmem:[%s392 + $0x30] sm:$0xff]
          %v446 = vld [vmem:[%s392 + $0x38] sm:$0xff]
          %v447 = vld [vmem:[%s392 + $0x40] sm:$0xff]
          %v448 = vld [vmem:[%s392 + $0x48] sm:$0xff]
          %v449 = vld [vmem:[%s392 + $0x50] sm:$0xff]
          %v450 = vld [vmem:[%s392 + $0x58] sm:$0xff]
          %v451 = vld [vmem:[%s392 + $0x60] sm:$0xff]
          %v452 = vld [vmem:[%s392 + $0x68] sm:$0xff]
          %v453 = vld [vmem:[%s392 + $0x70] sm:$0xff]
          %v454 = vld [vmem:[%s392 + $0x78] sm:$0xff]
          %v455 = vld [vmem:[%s392 + $0x80] sm:$0xff]
          %v456 = vld [vmem:[%s392 + $0x88] sm:$0xff]
          %v457 = vld [vmem:[%s392 + $0x90] sm:$0xff]
          %v458 = vld [vmem:[%s392 + $0x98] sm:$0xff]
          %v459 = vld [vmem:[%s392 + $0xa0] sm:$0xff]
          %v460 = vld [vmem:[%s392 + $0xa8] sm:$0xff]
          %v461 = vld [vmem:[%s392 + $0xb0] sm:$0xff]
          %v462 = vld [vmem:[%s392 + $0xb8] sm:$0xff]
          %v463 = vld [vmem:[%s392 + $0xc0] sm:$0xff]
          %v464 = vld [vmem:[%s392 + $0xc8] sm:$0xff]
          %v465 = vld [vmem:[%s392 + $0xd0] sm:$0xff]
          %v466 = vld [vmem:[%s392 + $0xd8] sm:$0xff]
          %v467 = vld [vmem:[%s392 + $0xe0] sm:$0xff]
          %v468 = vld [vmem:[%s392 + $0xe8] sm:$0xff]
          %v469 = vld [vmem:[%s392 + $0xf0] sm:$0xff]
          %v470 = vld [vmem:[%s392 + $0xf8] sm:$0xff]
          %v471 = vpack.c.bf16 %v440, %v439
          %v472 = vpack.c.bf16 %v442, %v441
          %v473 = vpack.c.bf16 %v444, %v443
          %v474 = vpack.c.bf16 %v446, %v445
          %v475 = vpack.c.bf16 %v448, %v447
          %v476 = vpack.c.bf16 %v450, %v449
          %v477 = vpack.c.bf16 %v452, %v451
          %v478 = vpack.c.bf16 %v454, %v453
          %v479 = vpack.c.bf16 %v456, %v455
          %v480 = vpack.c.bf16 %v458, %v457
          %v481 = vpack.c.bf16 %v460, %v459
          %v482 = vpack.c.bf16 %v462, %v461
          %v483 = vpack.c.bf16 %v464, %v463
          %v484 = vpack.c.bf16 %v466, %v465
          %v485 = vpack.c.bf16 %v468, %v467
          %v486 = vpack.c.bf16 %v470, %v469
          %vm487 = vcmask 523264
          %488 = vst.msk [vmem:[#allocation2] sm:$0xff] %vm487, %v471
          %489 = vst.msk [vmem:[#allocation2 + $0x8] sm:$0xff] %vm487, %v472
          %490 = vst.msk [vmem:[#allocation2 + $0x10] sm:$0xff] %vm487, %v473
          %491 = vst.msk [vmem:[#allocation2 + $0x18] sm:$0xff] %vm487, %v474
          %492 = vst.msk [vmem:[#allocation2 + $0x20] sm:$0xff] %vm487, %v475
          %493 = vst.msk [vmem:[#allocation2 + $0x28] sm:$0xff] %vm487, %v476
          %494 = vst.msk [vmem:[#allocation2 + $0x30] sm:$0xff] %vm487, %v477
          %495 = vst.msk [vmem:[#allocation2 + $0x38] sm:$0xff] %vm487, %v478
          %496 = vst.msk [vmem:[#allocation2 + $0x40] sm:$0xff] %vm487, %v479
          %497 = vst.msk [vmem:[#allocation2 + $0x48] sm:$0xff] %vm487, %v480
          %498 = vst.msk [vmem:[#allocation2 + $0x50] sm:$0xff] %vm487, %v481
          %499 = vst.msk [vmem:[#allocation2 + $0x58] sm:$0xff] %vm487, %v482
          %500 = vst.msk [vmem:[#allocation2 + $0x60] sm:$0xff] %vm487, %v483
          %501 = vst.msk [vmem:[#allocation2 + $0x68] sm:$0xff] %vm487, %v484
          %502 = vst.msk [vmem:[#allocation2 + $0x70] sm:$0xff] %vm487, %v485
          %503 = vst.msk [vmem:[#allocation2 + $0x78] sm:$0xff] %vm487, %v486
          %v504 = vld [vmem:[%s401] sm:$0xff]
          %v505 = vld [vmem:[%s401 + $0x8] sm:$0xff]
          %v506 = vld [vmem:[%s401 + $0x10] sm:$0xff]
          %v507 = vld [vmem:[%s401 + $0x18] sm:$0xff]
          %v508 = vld [vmem:[%s401 + $0x20] sm:$0xff]
          %v509 = vld [vmem:[%s401 + $0x28] sm:$0xff]
          %v510 = vld [vmem:[%s401 + $0x30] sm:$0xff]
          %v511 = vld [vmem:[%s401 + $0x38] sm:$0xff]
          %v512 = vld [vmem:[%s401 + $0x40] sm:$0xff]
          %v513 = vld [vmem:[%s401 + $0x48] sm:$0xff]
          %v514 = vld [vmem:[%s401 + $0x50] sm:$0xff]
          %v515 = vld [vmem:[%s401 + $0x58] sm:$0xff]
          %v516 = vld [vmem:[%s401 + $0x60] sm:$0xff]
          %v517 = vld [vmem:[%s401 + $0x68] sm:$0xff]
          %v518 = vld [vmem:[%s401 + $0x70] sm:$0xff]
          %v519 = vld [vmem:[%s401 + $0x78] sm:$0xff]
          %v520 = vld [vmem:[%s401 + $0x80] sm:$0xff]
          %v521 = vld [vmem:[%s401 + $0x88] sm:$0xff]
          %v522 = vld [vmem:[%s401 + $0x90] sm:$0xff]
          %v523 = vld [vmem:[%s401 + $0x98] sm:$0xff]
          %v524 = vld [vmem:[%s401 + $0xa0] sm:$0xff]
          %v525 = vld [vmem:[%s401 + $0xa8] sm:$0xff]
          %v526 = vld [vmem:[%s401 + $0xb0] sm:$0xff]
          %v527 = vld [vmem:[%s401 + $0xb8] sm:$0xff]
          %v528 = vld [vmem:[%s401 + $0xc0] sm:$0xff]
          %v529 = vld [vmem:[%s401 + $0xc8] sm:$0xff]
          %v530 = vld [vmem:[%s401 + $0xd0] sm:$0xff]
          %v531 = vld [vmem:[%s401 + $0xd8] sm:$0xff]
          %v532 = vld [vmem:[%s401 + $0xe0] sm:$0xff]
          %v533 = vld [vmem:[%s401 + $0xe8] sm:$0xff]
          %v534 = vld [vmem:[%s401 + $0xf0] sm:$0xff]
          %v535 = vld [vmem:[%s401 + $0xf8] sm:$0xff]
          %v536 = vpack.c.bf16 %v505, %v504
          %v537 = vpack.c.bf16 %v507, %v506
          %v538 = vpack.c.bf16 %v509, %v508
          %v539 = vpack.c.bf16 %v511, %v510
          %v540 = vpack.c.bf16 %v513, %v512
          %v541 = vpack.c.bf16 %v515, %v514
          %v542 = vpack.c.bf16 %v517, %v516
          %v543 = vpack.c.bf16 %v519, %v518
          %v544 = vpack.c.bf16 %v521, %v520
          %v545 = vpack.c.bf16 %v523, %v522
          %v546 = vpack.c.bf16 %v525, %v524
          %v547 = vpack.c.bf16 %v527, %v526
          %v548 = vpack.c.bf16 %v529, %v528
          %v549 = vpack.c.bf16 %v531, %v530
          %v550 = vpack.c.bf16 %v533, %v532
          %v551 = vpack.c.bf16 %v535, %v534
          %552 = vst.msk [vmem:[#allocation3] sm:$0xff] %vm487, %v536
          %553 = vst.msk [vmem:[#allocation3 + $0x8] sm:$0xff] %vm487, %v537
          %554 = vst.msk [vmem:[#allocation3 + $0x10] sm:$0xff] %vm487, %v538
          %555 = vst.msk [vmem:[#allocation3 + $0x18] sm:$0xff] %vm487, %v539
          %556 = vst.msk [vmem:[#allocation3 + $0x20] sm:$0xff] %vm487, %v540
          %557 = vst.msk [vmem:[#allocation3 + $0x28] sm:$0xff] %vm487, %v541
          %558 = vst.msk [vmem:[#allocation3 + $0x30] sm:$0xff] %vm487, %v542
          %559 = vst.msk [vmem:[#allocation3 + $0x38] sm:$0xff] %vm487, %v543
          %560 = vst.msk [vmem:[#allocation3 + $0x40] sm:$0xff] %vm487, %v544
          %561 = vst.msk [vmem:[#allocation3 + $0x48] sm:$0xff] %vm487, %v545
          %562 = vst.msk [vmem:[#allocation3 + $0x50] sm:$0xff] %vm487, %v546
          %563 = vst.msk [vmem:[#allocation3 + $0x58] sm:$0xff] %vm487, %v547
          %564 = vst.msk [vmem:[#allocation3 + $0x60] sm:$0xff] %vm487, %v548
          %565 = vst.msk [vmem:[#allocation3 + $0x68] sm:$0xff] %vm487, %v549
          %566 = vst.msk [vmem:[#allocation3 + $0x70] sm:$0xff] %vm487, %v550
          %567 = vst.msk [vmem:[#allocation3 + $0x78] sm:$0xff] %vm487, %v551
        $region40: #{tpu_custom_call.1} parent=35 // pred_fallthru
          _
        %v568 = vld [vmem:[%s382] sm:$0xff]
        %v569 = vld [vmem:[%s382 + $0x8] sm:$0xff]
        %v570 = vld [vmem:[%s382 + $0x10] sm:$0xff]
        %v571 = vld [vmem:[%s382 + $0x18] sm:$0xff]
        %v572 = vld [vmem:[%s382 + $0x20] sm:$0xff]
        %v573 = vld [vmem:[%s382 + $0x28] sm:$0xff]
        %v574 = vld [vmem:[%s382 + $0x30] sm:$0xff]
        %v575 = vld [vmem:[%s382 + $0x38] sm:$0xff]
        %v576 = vld [vmem:[%s382 + $0x40] sm:$0xff]
        %v577 = vld [vmem:[%s382 + $0x48] sm:$0xff]
        %v578 = vld [vmem:[%s382 + $0x50] sm:$0xff]
        %v579 = vld [vmem:[%s382 + $0x58] sm:$0xff]
        %v580 = vld [vmem:[%s382 + $0x60] sm:$0xff]
        %v581 = vld [vmem:[%s382 + $0x68] sm:$0xff]
        %v582 = vld [vmem:[%s382 + $0x70] sm:$0xff]
        %v583 = vld [vmem:[%s382 + $0x78] sm:$0xff]
        %v584 = vld [vmem:[%s382 + $0x80] sm:$0xff]
        %v585 = vld [vmem:[%s382 + $0x88] sm:$0xff]
        %v586 = vld [vmem:[%s382 + $0x90] sm:$0xff]
        %v587 = vld [vmem:[%s382 + $0x98] sm:$0xff]
        %v588 = vld [vmem:[%s382 + $0xa0] sm:$0xff]
        %v589 = vld [vmem:[%s382 + $0xa8] sm:$0xff]
        %v590 = vld [vmem:[%s382 + $0xb0] sm:$0xff]
        %v591 = vld [vmem:[%s382 + $0xb8] sm:$0xff]
        %v592 = vld [vmem:[%s382 + $0xc0] sm:$0xff]
        %v593 = vld [vmem:[%s382 + $0xc8] sm:$0xff]
        %v594 = vld [vmem:[%s382 + $0xd0] sm:$0xff]
        %v595 = vld [vmem:[%s382 + $0xd8] sm:$0xff]
        %v596 = vld [vmem:[%s382 + $0xe0] sm:$0xff]
        %v597 = vld [vmem:[%s382 + $0xe8] sm:$0xff]
        %v598 = vld [vmem:[%s382 + $0xf0] sm:$0xff]
        %v599 = vld [vmem:[%s382 + $0xf8] sm:$0xff]
        %v600 = vmul.f32 %v568, 0.125
        %v601 = vmul.f32 %v569, 0.125
        %v602 = vmul.f32 %v570, 0.125
        %v603 = vmul.f32 %v571, 0.125
        %v604 = vmul.f32 %v572, 0.125
        %v605 = vmul.f32 %v573, 0.125
        %v606 = vmul.f32 %v574, 0.125
        %v607 = vmul.f32 %v575, 0.125
        %v608 = vmul.f32 %v576, 0.125
        %v609 = vmul.f32 %v577, 0.125
        %v610 = vmul.f32 %v578, 0.125
        %v611 = vmul.f32 %v579, 0.125
        %v612 = vmul.f32 %v580, 0.125
        %v613 = vmul.f32 %v581, 0.125
        %v614 = vmul.f32 %v582, 0.125
        %v615 = vmul.f32 %v583, 0.125
        %v616 = vmul.f32 %v584, 0.125
        %v617 = vmul.f32 %v585, 0.125
        %v618 = vmul.f32 %v586, 0.125
        %v619 = vmul.f32 %v587, 0.125
        %v620 = vmul.f32 %v588, 0.125
        %v621 = vmul.f32 %v589, 0.125
        %v622 = vmul.f32 %v590, 0.125
        %v623 = vmul.f32 %v591, 0.125
        %v624 = vmul.f32 %v592, 0.125
        %v625 = vmul.f32 %v593, 0.125
        %v626 = vmul.f32 %v594, 0.125
        %v627 = vmul.f32 %v595, 0.125
        %v628 = vmul.f32 %v596, 0.125
        %v629 = vmul.f32 %v597, 0.125
        %v630 = vmul.f32 %v598, 0.125
        %v631 = vmul.f32 %v599, 0.125
        %v632 = vpack.c.bf16 %v601, %v600
        %v633 = vpack.c.bf16 %v603, %v602
        %v634 = vpack.c.bf16 %v605, %v604
        %v635 = vpack.c.bf16 %v607, %v606
        %v636 = vpack.c.bf16 %v609, %v608
        %v637 = vpack.c.bf16 %v611, %v610
        %v638 = vpack.c.bf16 %v613, %v612
        %v639 = vpack.c.bf16 %v615, %v614
        %v640 = vpack.c.bf16 %v617, %v616
        %v641 = vpack.c.bf16 %v619, %v618
        %v642 = vpack.c.bf16 %v621, %v620
        %v643 = vpack.c.bf16 %v623, %v622
        %v644 = vpack.c.bf16 %v625, %v624
        %v645 = vpack.c.bf16 %v627, %v626
        %v646 = vpack.c.bf16 %v629, %v628
        %v647 = vpack.c.bf16 %v631, %v630
        %v648 = vld [vmem:[#allocation2] sm:$0xff]
        %v649 = vld [vmem:[#allocation2 + $0x8] sm:$0xff]
        %v650 = vld [vmem:[#allocation2 + $0x10] sm:$0xff]
        %v651 = vld [vmem:[#allocation2 + $0x18] sm:$0xff]
        %v652 = vld [vmem:[#allocation2 + $0x20] sm:$0xff]
        %v653 = vld [vmem:[#allocation2 + $0x28] sm:$0xff]
        %v654 = vld [vmem:[#allocation2 + $0x30] sm:$0xff]
        %v655 = vld [vmem:[#allocation2 + $0x38] sm:$0xff]
        %v656 = vld [vmem:[#allocation2 + $0x40] sm:$0xff]
        %v657 = vld [vmem:[#allocation2 + $0x48] sm:$0xff]
        %v658 = vld [vmem:[#allocation2 + $0x50] sm:$0xff]
        %v659 = vld [vmem:[#allocation2 + $0x58] sm:$0xff]
        %v660 = vld [vmem:[#allocation2 + $0x60] sm:$0xff]
        %v661 = vld [vmem:[#allocation2 + $0x68] sm:$0xff]
        %v662 = vld [vmem:[#allocation2 + $0x70] sm:$0xff]
        %v663 = vld [vmem:[#allocation2 + $0x78] sm:$0xff]
        %vm664 = vcmask 523264
        %v666 = vsel %vm664, %v632, 0
        %v669 = vsel %vm664, %v633, 0
        %v672 = vsel %vm664, %v634, 0
        %v675 = vsel %vm664, %v635, 0
        %v678 = vsel %vm664, %v636, 0
        %v681 = vsel %vm664, %v637, 0
        %v684 = vsel %vm664, %v638, 0
        %v687 = vsel %vm664, %v639, 0
        %v690 = vsel %vm664, %v640, 0
        %v693 = vsel %vm664, %v641, 0
        %v696 = vsel %vm664, %v642, 0
        %v699 = vsel %vm664, %v643, 0
        %v702 = vsel %vm664, %v644, 0
        %v705 = vsel %vm664, %v645, 0
        %v708 = vsel %vm664, %v646, 0
        %v711 = vsel %vm664, %v647, 0
        %v714 = vsel %vm664, %v648, 0
        %v717 = vsel %vm664, %v649, 0
        %v720 = vsel %vm664, %v650, 0
        %v723 = vsel %vm664, %v651, 0
        %v726 = vsel %vm664, %v652, 0
        %v729 = vsel %vm664, %v653, 0
        %v732 = vsel %vm664, %v654, 0
        %v735 = vsel %vm664, %v655, 0
        %v738 = vsel %vm664, %v656, 0
        %v741 = vsel %vm664, %v657, 0
        %v744 = vsel %vm664, %v658, 0
        %v747 = vsel %vm664, %v659, 0
        %v750 = vsel %vm664, %v660, 0
        %v753 = vsel %vm664, %v661, 0
        %v756 = vsel %vm664, %v662, 0
        %v759 = vsel %vm664, %v663, 0
        %761 = vmatprep.subr.bf16.mxu0 0
        %762 = vmatpush1.bf16.xpose.msra.mxu0 %v714
        %763 = vmatprep.subr.bf16.mxu0 0
        %764 = vmatpush1.bf16.xpose.msra.mxu0 %v717
        %765 = vmatprep.subr.bf16.mxu0 0
        %766 = vmatpush1.bf16.xpose.msra.mxu0 %v720
        %767 = vmatprep.subr.bf16.mxu0 0
        %768 = vmatpush1.bf16.xpose.msra.mxu0 %v723
        %769 = vmatprep.subr.bf16.mxu0 0
        %770 = vmatpush1.bf16.xpose.msra.mxu0 %v726
        %771 = vmatprep.subr.bf16.mxu0 0
        %772 = vmatpush1.bf16.xpose.msra.mxu0 %v729
        %773 = vmatprep.subr.bf16.mxu0 0
        %774 = vmatpush1.bf16.xpose.msra.mxu0 %v732
        %775 = vmatprep.subr.bf16.mxu0 0
        %776 = vmatpush1.bf16.xpose.msra.mxu0 %v735
        %777 = vmatprep.subr.bf16.mxu0 0
        %778 = vmatpush1.bf16.xpose.msra.mxu0 %v738
        %779 = vmatprep.subr.bf16.mxu0 0
        %780 = vmatpush1.bf16.xpose.msra.mxu0 %v741
        %781 = vmatprep.subr.bf16.mxu0 0
        %782 = vmatpush1.bf16.xpose.msra.mxu0 %v744
        %783 = vmatprep.subr.bf16.mxu0 0
        %784 = vmatpush1.bf16.xpose.msra.mxu0 %v747
        %785 = vmatprep.subr.bf16.mxu0 0
        %786 = vmatpush1.bf16.xpose.msra.mxu0 %v750
        %787 = vmatprep.subr.bf16.mxu0 0
        %788 = vmatpush1.bf16.xpose.msra.mxu0 %v753
        %789 = vmatprep.subr.bf16.mxu0 0
        %790 = vmatpush1.bf16.xpose.msra.mxu0 %v756
        %791 = vmatprep.subr.bf16.mxu0 0
        %792 = vmatpush1.bf16.xpose.msra.mxu0 %v759
        %793 = vmatprep.mubr.bf16.mxu0 0
        %794 = vmatmul.mubr.bf16.gmra.mrb[0].mxu0 %v666
        %v795 = vpop.f32.mrb[0].mxu0
        %v796 = vadd.f32 0.0, %v795
        %v797 = vpop.f32.mrb[0].mxu0
        %v798 = vadd.f32 0.0, %v797
        %v799 = vpop.f32.mrb[0].mxu0
        %v800 = vadd.f32 0.0, %v799
        %v801 = vpop.f32.mrb[0].mxu0
        %v802 = vadd.f32 0.0, %v801
        %803 = vmatprep.mubr.bf16.mxu0 0
        %804 = vmatmul.mubr.bf16.gmra.mrb[0].mxu0 %v669
        %v805 = vpop.f32.mrb[0].mxu0
        %v806 = vadd.f32 0.0, %v805
        %v807 = vpop.f32.mrb[0].mxu0
        %v808 = vadd.f32 0.0, %v807
        %v809 = vpop.f32.mrb[0].mxu0
        %v810 = vadd.f32 0.0, %v809
        %v811 = vpop.f32.mrb[0].mxu0
        %v812 = vadd.f32 0.0, %v811
        %813 = vmatprep.mubr.bf16.mxu0 0
        %814 = vmatmul.mubr.bf16.gmra.mrb[0].mxu0 %v672
        %v815 = vpop.f32.mrb[0].mxu0
        %v816 = vadd.f32 0.0, %v815
        %v817 = vpop.f32.mrb[0].mxu0
        %v818 = vadd.f32 0.0, %v817
        %v819 = vpop.f32.mrb[0].mxu0
        %v820 = vadd.f32 0.0, %v819
        %v821 = vpop.f32.mrb[0].mxu0
        %v822 = vadd.f32 0.0, %v821
        %823 = vmatprep.mubr.bf16.mxu0 0
        %824 = vmatmul.mubr.bf16.gmra.mrb[0].mxu0 %v675
        %v825 = vpop.f32.mrb[0].mxu0
        %v826 = vadd.f32 0.0, %v825
        %v827 = vpop.f32.mrb[0].mxu0
        %v828 = vadd.f32 0.0, %v827
        %v829 = vpop.f32.mrb[0].mxu0
        %v830 = vadd.f32 0.0, %v829
        %v831 = vpop.f32.mrb[0].mxu0
        %v832 = vadd.f32 0.0, %v831
        %833 = vmatprep.mubr.bf16.mxu0 0
        %834 = vmatmul.mubr.bf16.gmra.mrb[0].mxu0 %v678
        %v835 = vpop.f32.mrb[0].mxu0
        %v836 = vadd.f32 0.0, %v835
        %v837 = vpop.f32.mrb[0].mxu0
        %v838 = vadd.f32 0.0, %v837
        %v839 = vpop.f32.mrb[0].mxu0
        %v840 = vadd.f32 0.0, %v839
        %v841 = vpop.f32.mrb[0].mxu0
        %v842 = vadd.f32 0.0, %v841
        %843 = vmatprep.mubr.bf16.mxu0 0
        %844 = vmatmul.mubr.bf16.gmra.mrb[0].mxu0 %v681
        %v845 = vpop.f32.mrb[0].mxu0
        %v846 = vadd.f32 0.0, %v845
        %v847 = vpop.f32.mrb[0].mxu0
        %v848 = vadd.f32 0.0, %v847
        %v849 = vpop.f32.mrb[0].mxu0
        %v850 = vadd.f32 0.0, %v849
        %v851 = vpop.f32.mrb[0].mxu0
        %v852 = vadd.f32 0.0, %v851
        %853 = vmatprep.mubr.bf16.mxu0 0
        %854 = vmatmul.mubr.bf16.gmra.mrb[0].mxu0 %v684
        %v855 = vpop.f32.mrb[0].mxu0
        %v856 = vadd.f32 0.0, %v855
        %v857 = vpop.f32.mrb[0].mxu0
        %v858 = vadd.f32 0.0, %v857
        %v859 = vpop.f32.mrb[0].mxu0
        %v860 = vadd.f32 0.0, %v859
        %v861 = vpop.f32.mrb[0].mxu0
        %v862 = vadd.f32 0.0, %v861
        %863 = vmatprep.mubr.bf16.mxu0 0
        %864 = vmatmul.mubr.bf16.gmra.mrb[0].mxu0 %v687
        %v865 = vpop.f32.mrb[0].mxu0
        %v866 = vadd.f32 0.0, %v865
        %v867 = vpop.f32.mrb[0].mxu0
        %v868 = vadd.f32 0.0, %v867
        %v869 = vpop.f32.mrb[0].mxu0
        %v870 = vadd.f32 0.0, %v869
        %v871 = vpop.f32.mrb[0].mxu0
        %v872 = vadd.f32 0.0, %v871
        %873 = vmatprep.mubr.bf16.mxu0 0
        %874 = vmatmul.mubr.bf16.gmra.mrb[0].mxu0 %v690
        %v875 = vpop.f32.mrb[0].mxu0
        %v876 = vadd.f32 0.0, %v875
        %v877 = vpop.f32.mrb[0].mxu0
        %v878 = vadd.f32 0.0, %v877
        %v879 = vpop.f32.mrb[0].mxu0
        %v880 = vadd.f32 0.0, %v879
        %v881 = vpop.f32.mrb[0].mxu0
        %v882 = vadd.f32 0.0, %v881
        %883 = vmatprep.mubr.bf16.mxu0 0
        %884 = vmatmul.mubr.bf16.gmra.mrb[0].mxu0 %v693
        %v885 = vpop.f32.mrb[0].mxu0
        %v886 = vadd.f32 0.0, %v885
        %v887 = vpop.f32.mrb[0].mxu0
        %v888 = vadd.f32 0.0, %v887
        %v889 = vpop.f32.mrb[0].mxu0
        %v890 = vadd.f32 0.0, %v889
        %v891 = vpop.f32.mrb[0].mxu0
        %v892 = vadd.f32 0.0, %v891
        %893 = vmatprep.mubr.bf16.mxu0 0
        %894 = vmatmul.mubr.bf16.gmra.mrb[0].mxu0 %v696
        %v895 = vpop.f32.mrb[0].mxu0
        %v896 = vadd.f32 0.0, %v895
        %v897 = vpop.f32.mrb[0].mxu0
        %v898 = vadd.f32 0.0, %v897
        %v899 = vpop.f32.mrb[0].mxu0
        %v900 = vadd.f32 0.0, %v899
        %v901 = vpop.f32.mrb[0].mxu0
        %v902 = vadd.f32 0.0, %v901
        %903 = vmatprep.mubr.bf16.mxu0 0
        %904 = vmatmul.mubr.bf16.gmra.mrb[0].mxu0 %v699
        %v905 = vpop.f32.mrb[0].mxu0
        %v906 = vadd.f32 0.0, %v905
        %v907 = vpop.f32.mrb[0].mxu0
        %v908 = vadd.f32 0.0, %v907
        %v909 = vpop.f32.mrb[0].mxu0
        %v910 = vadd.f32 0.0, %v909
        %v911 = vpop.f32.mrb[0].mxu0
        %v912 = vadd.f32 0.0, %v911
        %913 = vmatprep.mubr.bf16.mxu0 0
        %914 = vmatmul.mubr.bf16.gmra.mrb[0].mxu0 %v702
        %v915 = vpop.f32.mrb[0].mxu0
        %v916 = vadd.f32 0.0, %v915
        %v917 = vpop.f32.mrb[0].mxu0
        %v918 = vadd.f32 0.0, %v917
        %v919 = vpop.f32.mrb[0].mxu0
        %v920 = vadd.f32 0.0, %v919
        %v921 = vpop.f32.mrb[0].mxu0
        %v922 = vadd.f32 0.0, %v921
        %923 = vmatprep.mubr.bf16.mxu0 0
        %924 = vmatmul.mubr.bf16.gmra.mrb[0].mxu0 %v705
        %v925 = vpop.f32.mrb[0].mxu0
        %v926 = vadd.f32 0.0, %v925
        %v927 = vpop.f32.mrb[0].mxu0
        %v928 = vadd.f32 0.0, %v927
        %v929 = vpop.f32.mrb[0].mxu0
        %v930 = vadd.f32 0.0, %v929
        %v931 = vpop.f32.mrb[0].mxu0
        %v932 = vadd.f32 0.0, %v931
        %933 = vmatprep.mubr.bf16.mxu0 0
        %934 = vmatmul.mubr.bf16.gmra.mrb[0].mxu0 %v708
        %v935 = vpop.f32.mrb[0].mxu0
        %v936 = vadd.f32 0.0, %v935
        %v937 = vpop.f32.mrb[0].mxu0
        %v938 = vadd.f32 0.0, %v937
        %v939 = vpop.f32.mrb[0].mxu0
        %v940 = vadd.f32 0.0, %v939
        %v941 = vpop.f32.mrb[0].mxu0
        %v942 = vadd.f32 0.0, %v941
        %943 = vmatprep.mubr.bf16.mxu0 0
        %944 = vmatmul.mubr.bf16.gmra.mrb[0].mxu0 %v711
        %v945 = vpop.f32.mrb[0].mxu0
        %v946 = vadd.f32 0.0, %v945
        %v947 = vpop.f32.mrb[0].mxu0
        %v948 = vadd.f32 0.0, %v947
        %v949 = vpop.f32.mrb[0].mxu0
        %v950 = vadd.f32 0.0, %v949
        %v951 = vpop.f32.mrb[0].mxu0
        %v952 = vadd.f32 0.0, %v951
        %953 = vdwg.mxu0
        %v954 = vld [vmem:[%s415] sm:$0xff]
        %v955 = vld [vmem:[%s415 + $0x8] sm:$0xff]
        %v956 = vld [vmem:[%s415 + $0x10] sm:$0xff]
        %v957 = vld [vmem:[%s415 + $0x18] sm:$0xff]
        %v958 = vld [vmem:[%s415 + $0x20] sm:$0xff]
        %v959 = vld [vmem:[%s415 + $0x28] sm:$0xff]
        %v960 = vld [vmem:[%s415 + $0x30] sm:$0xff]
        %v961 = vld [vmem:[%s415 + $0x38] sm:$0xff]
        %v962 = vld [vmem:[%s415 + $0x40] sm:$0xff]
        %v963 = vld [vmem:[%s415 + $0x48] sm:$0xff]
        %v964 = vld [vmem:[%s415 + $0x50] sm:$0xff]
        %v965 = vld [vmem:[%s415 + $0x58] sm:$0xff]
        %v966 = vld [vmem:[%s415 + $0x60] sm:$0xff]
        %v967 = vld [vmem:[%s415 + $0x68] sm:$0xff]
        %v968 = vld [vmem:[%s415 + $0x70] sm:$0xff]
        %v969 = vld [vmem:[%s415 + $0x78] sm:$0xff]
        %vm970 = vnez %v954
        %vm971 = vnez %v955
        %vm972 = vnez %v956
        %vm973 = vnez %v957
        %vm974 = vnez %v958
        %vm975 = vnez %v959
        %vm976 = vnez %v960
        %vm977 = vnez %v961
        %vm978 = vnez %v962
        %vm979 = vnez %v963
        %vm980 = vnez %v964
        %vm981 = vnez %v965
        %vm982 = vnez %v966
        %vm983 = vnez %v967
        %vm984 = vnez %v968
        %vm985 = vnez %v969
        %v986 = vsel %vm970, 16843009, 0
        %v987 = vsel %vm971, 16843009, 0
        %v988 = vsel %vm972, 16843009, 0
        %v989 = vsel %vm973, 16843009, 0
        %v990 = vsel %vm974, 16843009, 0
        %v991 = vsel %vm975, 16843009, 0
        %v992 = vsel %vm976, 16843009, 0
        %v993 = vsel %vm977, 16843009, 0
        %v994 = vsel %vm978, 16843009, 0
        %v995 = vsel %vm979, 16843009, 0
        %v996 = vsel %vm980, 16843009, 0
        %v997 = vsel %vm981, 16843009, 0
        %v998 = vsel %vm982, 16843009, 0
        %v999 = vsel %vm983, 16843009, 0
        %v1000 = vsel %vm984, 16843009, 0
        %v1001 = vsel %vm985, 16843009, 0
        %v1002 = vunpack.c.0.s8 %v986
        %v1003 = vunpack.c.0.s8 %v987
        %v1004 = vunpack.c.1.s8 %v986
        %v1005 = vunpack.c.1.s8 %v987
        %v1006 = vunpack.c.2.s8 %v986
        %v1007 = vunpack.c.2.s8 %v987
        %v1008 = vunpack.c.3.s8 %v986
        %v1009 = vunpack.c.3.s8 %v987
        %v1010 = vunpack.c.0.s8 %v988
        %v1011 = vunpack.c.0.s8 %v989
        %v1012 = vunpack.c.1.s8 %v988
        %v1013 = vunpack.c.1.s8 %v989
        %v1014 = vunpack.c.2.s8 %v988
        %v1015 = vunpack.c.2.s8 %v989
        %v1016 = vunpack.c.3.s8 %v988
        %v1017 = vunpack.c.3.s8 %v989
        %v1018 = vunpack.c.0.s8 %v990
        %v1019 = vunpack.c.0.s8 %v991
        %v1020 = vunpack.c.1.s8 %v990
        %v1021 = vunpack.c.1.s8 %v991
        %v1022 = vunpack.c.2.s8 %v990
        %v1023 = vunpack.c.2.s8 %v991
        %v1024 = vunpack.c.3.s8 %v990
        %v1025 = vunpack.c.3.s8 %v991
        %v1026 = vunpack.c.0.s8 %v992
        %v1027 = vunpack.c.0.s8 %v993
        %v1028 = vunpack.c.1.s8 %v992
        %v1029 = vunpack.c.1.s8 %v993
        %v1030 = vunpack.c.2.s8 %v992
        %v1031 = vunpack.c.2.s8 %v993
        %v1032 = vunpack.c.3.s8 %v992
        %v1033 = vunpack.c.3.s8 %v993
        %v1034 = vunpack.c.0.s8 %v994
        %v1035 = vunpack.c.0.s8 %v995
        %v1036 = vunpack.c.1.s8 %v994
        %v1037 = vunpack.c.1.s8 %v995
        %v1038 = vunpack.c.2.s8 %v994
        %v1039 = vunpack.c.2.s8 %v995
        %v1040 = vunpack.c.3.s8 %v994
        %v1041 = vunpack.c.3.s8 %v995
        %v1042 = vunpack.c.0.s8 %v996
        %v1043 = vunpack.c.0.s8 %v997
        %v1044 = vunpack.c.1.s8 %v996
        %v1045 = vunpack.c.1.s8 %v997
        %v1046 = vunpack.c.2.s8 %v996
        %v1047 = vunpack.c.2.s8 %v997
        %v1048 = vunpack.c.3.s8 %v996
        %v1049 = vunpack.c.3.s8 %v997
        %v1050 = vunpack.c.0.s8 %v998
        %v1051 = vunpack.c.0.s8 %v999
        %v1052 = vunpack.c.1.s8 %v998
        %v1053 = vunpack.c.1.s8 %v999
        %v1054 = vunpack.c.2.s8 %v998
        %v1055 = vunpack.c.2.s8 %v999
        %v1056 = vunpack.c.3.s8 %v998
        %v1057 = vunpack.c.3.s8 %v999
        %v1058 = vunpack.c.0.s8 %v1000
        %v1059 = vunpack.c.0.s8 %v1001
        %v1060 = vunpack.c.1.s8 %v1000
        %v1061 = vunpack.c.1.s8 %v1001
        %v1062 = vunpack.c.2.s8 %v1000
        %v1063 = vunpack.c.2.s8 %v1001
        %v1064 = vunpack.c.3.s8 %v1000
        %v1065 = vunpack.c.3.s8 %v1001
        %v1066 = vpack.c.b16 %v1003, %v1002
        %v1067 = vpack.c.b8 %v1066, %v1066
        %v1068 = vpack.c.b16 %v1005, %v1004
        %v1069 = vpack.c.b8 %v1068, %v1068
        %v1070 = vpack.c.b16 %v1007, %v1006
        %v1071 = vpack.c.b8 %v1070, %v1070
        %v1072 = vpack.c.b16 %v1009, %v1008
        %v1073 = vpack.c.b8 %v1072, %v1072
        %v1074 = vpack.c.b16 %v1011, %v1010
        %v1075 = vpack.c.b8 %v1074, %v1074
        %v1076 = vpack.c.b16 %v1013, %v1012
        %v1077 = vpack.c.b8 %v1076, %v1076
        %v1078 = vpack.c.b16 %v1015, %v1014
        %v1079 = vpack.c.b8 %v1078, %v1078
        %v1080 = vpack.c.b16 %v1017, %v1016
        %v1081 = vpack.c.b8 %v1080, %v1080
        %v1082 = vpack.c.b16 %v1019, %v1018
        %v1083 = vpack.c.b8 %v1082, %v1082
        %v1084 = vpack.c.b16 %v1021, %v1020
        %v1085 = vpack.c.b8 %v1084, %v1084
        %v1086 = vpack.c.b16 %v1023, %v1022
        %v1087 = vpack.c.b8 %v1086, %v1086
        %v1088 = vpack.c.b16 %v1025, %v1024
        %v1089 = vpack.c.b8 %v1088, %v1088
        %v1090 = vpack.c.b16 %v1027, %v1026
        %v1091 = vpack.c.b8 %v1090, %v1090
        %v1092 = vpack.c.b16 %v1029, %v1028
        %v1093 = vpack.c.b8 %v1092, %v1092
        %v1094 = vpack.c.b16 %v1031, %v1030
        %v1095 = vpack.c.b8 %v1094, %v1094
        %v1096 = vpack.c.b16 %v1033, %v1032
        %v1097 = vpack.c.b8 %v1096, %v1096
        %v1098 = vpack.c.b16 %v1035, %v1034
        %v1099 = vpack.c.b8 %v1098, %v1098
        %v1100 = vpack.c.b16 %v1037, %v1036
        %v1101 = vpack.c.b8 %v1100, %v1100
        %v1102 = vpack.c.b16 %v1039, %v1038
        %v1103 = vpack.c.b8 %v1102, %v1102
        %v1104 = vpack.c.b16 %v1041, %v1040
        %v1105 = vpack.c.b8 %v1104, %v1104
        %v1106 = vpack.c.b16 %v1043, %v1042
        %v1107 = vpack.c.b8 %v1106, %v1106
        %v1108 = vpack.c.b16 %v1045, %v1044
        %v1109 = vpack.c.b8 %v1108, %v1108
        %v1110 = vpack.c.b16 %v1047, %v1046
        %v1111 = vpack.c.b8 %v1110, %v1110
        %v1112 = vpack.c.b16 %v1049, %v1048
        %v1113 = vpack.c.b8 %v1112, %v1112
        %v1114 = vpack.c.b16 %v1051, %v1050
        %v1115 = vpack.c.b8 %v1114, %v1114
        %v1116 = vpack.c.b16 %v1053, %v1052
        %v1117 = vpack.c.b8 %v1116, %v1116
        %v1118 = vpack.c.b16 %v1055, %v1054
        %v1119 = vpack.c.b8 %v1118, %v1118
        %v1120 = vpack.c.b16 %v1057, %v1056
        %v1121 = vpack.c.b8 %v1120, %v1120
        %v1122 = vpack.c.b16 %v1059, %v1058
        %v1123 = vpack.c.b8 %v1122, %v1122
        %v1124 = vpack.c.b16 %v1061, %v1060
        %v1125 = vpack.c.b8 %v1124, %v1124
        %v1126 = vpack.c.b16 %v1063, %v1062
        %v1127 = vpack.c.b8 %v1126, %v1126
        %v1128 = vpack.c.b16 %v1065, %v1064
        %v1129 = vpack.c.b8 %v1128, %v1128
        %vm1130 = vnez %v1067
        %vm1131 = vnez %v1069
        %vm1132 = vnez %v1071
        %vm1133 = vnez %v1073
        %vm1134 = vnez %v1075
        %vm1135 = vnez %v1077
        %vm1136 = vnez %v1079
        %vm1137 = vnez %v1081
        %vm1138 = vnez %v1083
        %vm1139 = vnez %v1085
        %vm1140 = vnez %v1087
        %vm1141 = vnez %v1089
        %vm1142 = vnez %v1091
        %vm1143 = vnez %v1093
        %vm1144 = vnez %v1095
        %vm1145 = vnez %v1097
        %vm1146 = vnez %v1099
        %vm1147 = vnez %v1101
        %vm1148 = vnez %v1103
        %vm1149 = vnez %v1105
        %vm1150 = vnez %v1107
        %vm1151 = vnez %v1109
        %vm1152 = vnez %v1111
        %vm1153 = vnez %v1113
        %vm1154 = vnez %v1115
        %vm1155 = vnez %v1117
        %vm1156 = vnez %v1119
        %vm1157 = vnez %v1121
        %vm1158 = vnez %v1123
        %vm1159 = vnez %v1125
        %vm1160 = vnez %v1127
        %vm1161 = vnez %v1129
        %v1162 = vsel %vm1130, 16843009, 0
        %v1163 = vsel %vm1131, 16843009, 0
        %v1164 = vsel %vm1132, 16843009, 0
        %v1165 = vsel %vm1133, 16843009, 0
        %v1166 = vsel %vm1134, 16843009, 0
        %v1167 = vsel %vm1135, 16843009, 0
        %v1168 = vsel %vm1136, 16843009, 0
        %v1169 = vsel %vm1137, 16843009, 0
        %v1170 = vsel %vm1138, 16843009, 0
        %v1171 = vsel %vm1139, 16843009, 0
        %v1172 = vsel %vm1140, 16843009, 0
        %v1173 = vsel %vm1141, 16843009, 0
        %v1174 = vsel %vm1142, 16843009, 0
        %v1175 = vsel %vm1143, 16843009, 0
        %v1176 = vsel %vm1144, 16843009, 0
        %v1177 = vsel %vm1145, 16843009, 0
        %v1178 = vsel %vm1146, 16843009, 0
        %v1179 = vsel %vm1147, 16843009, 0
        %v1180 = vsel %vm1148, 16843009, 0
        %v1181 = vsel %vm1149, 16843009, 0
        %v1182 = vsel %vm1150, 16843009, 0
        %v1183 = vsel %vm1151, 16843009, 0
        %v1184 = vsel %vm1152, 16843009, 0
        %v1185 = vsel %vm1153, 16843009, 0
        %v1186 = vsel %vm1154, 16843009, 0
        %v1187 = vsel %vm1155, 16843009, 0
        %v1188 = vsel %vm1156, 16843009, 0
        %v1189 = vsel %vm1157, 16843009, 0
        %v1190 = vsel %vm1158, 16843009, 0
        %v1191 = vsel %vm1159, 16843009, 0
        %v1192 = vsel %vm1160, 16843009, 0
        %v1193 = vsel %vm1161, 16843009, 0
        %v1194 = vunpack.c.0.s8 %v1162
        %v1195 = vunpack.c.1.s8 %v1162
        %v1196 = vunpack.c.0.s8 %v1163
        %v1197 = vunpack.c.1.s8 %v1163
        %v1198 = vunpack.c.0.s8 %v1164
        %v1199 = vunpack.c.1.s8 %v1164
        %v1200 = vunpack.c.0.s8 %v1165
        %v1201 = vunpack.c.1.s8 %v1165
        %v1202 = vunpack.c.0.s8 %v1166
        %v1203 = vunpack.c.1.s8 %v1166
        %v1204 = vunpack.c.0.s8 %v1167
        %v1205 = vunpack.c.1.s8 %v1167
        %v1206 = vunpack.c.0.s8 %v1168
        %v1207 = vunpack.c.1.s8 %v1168
        %v1208 = vunpack.c.0.s8 %v1169
        %v1209 = vunpack.c.1.s8 %v1169
        %v1210 = vunpack.c.0.s8 %v1170
        %v1211 = vunpack.c.1.s8 %v1170
        %v1212 = vunpack.c.0.s8 %v1171
        %v1213 = vunpack.c.1.s8 %v1171
        %v1214 = vunpack.c.0.s8 %v1172
        %v1215 = vunpack.c.1.s8 %v1172
        %v1216 = vunpack.c.0.s8 %v1173
        %v1217 = vunpack.c.1.s8 %v1173
        %v1218 = vunpack.c.0.s8 %v1174
        %v1219 = vunpack.c.1.s8 %v1174
        %v1220 = vunpack.c.0.s8 %v1175
        %v1221 = vunpack.c.1.s8 %v1175
        %v1222 = vunpack.c.0.s8 %v1176
        %v1223 = vunpack.c.1.s8 %v1176
        %v1224 = vunpack.c.0.s8 %v1177
        %v1225 = vunpack.c.1.s8 %v1177
        %v1226 = vunpack.c.0.s8 %v1178
        %v1227 = vunpack.c.1.s8 %v1178
        %v1228 = vunpack.c.0.s8 %v1179
        %v1229 = vunpack.c.1.s8 %v1179
        %v1230 = vunpack.c.0.s8 %v1180
        %v1231 = vunpack.c.1.s8 %v1180
        %v1232 = vunpack.c.0.s8 %v1181
        %v1233 = vunpack.c.1.s8 %v1181
        %v1234 = vunpack.c.0.s8 %v1182
        %v1235 = vunpack.c.1.s8 %v1182
        %v1236 = vunpack.c.0.s8 %v1183
        %v1237 = vunpack.c.1.s8 %v1183
        %v1238 = vunpack.c.0.s8 %v1184
        %v1239 = vunpack.c.1.s8 %v1184
        %v1240 = vunpack.c.0.s8 %v1185
        %v1241 = vunpack.c.1.s8 %v1185
        %v1242 = vunpack.c.0.s8 %v1186
        %v1243 = vunpack.c.1.s8 %v1186
        %v1244 = vunpack.c.0.s8 %v1187
        %v1245 = vunpack.c.1.s8 %v1187
        %v1246 = vunpack.c.0.s8 %v1188
        %v1247 = vunpack.c.1.s8 %v1188
        %v1248 = vunpack.c.0.s8 %v1189
        %v1249 = vunpack.c.1.s8 %v1189
        %v1250 = vunpack.c.0.s8 %v1190
        %v1251 = vunpack.c.1.s8 %v1190
        %v1252 = vunpack.c.0.s8 %v1191
        %v1253 = vunpack.c.1.s8 %v1191
        %v1254 = vunpack.c.0.s8 %v1192
        %v1255 = vunpack.c.1.s8 %v1192
        %v1256 = vunpack.c.0.s8 %v1193
        %v1257 = vunpack.c.1.s8 %v1193
        %vm1258 = vcmp.ne.s32.totalorder %v1194, 0
        %vm1259 = vcmp.ne.s32.totalorder %v1195, 0
        %vm1260 = vcmp.ne.s32.totalorder %v1196, 0
        %vm1261 = vcmp.ne.s32.totalorder %v1197, 0
        %vm1262 = vcmp.ne.s32.totalorder %v1198, 0
        %vm1263 = vcmp.ne.s32.totalorder %v1199, 0
        %vm1264 = vcmp.ne.s32.totalorder %v1200, 0
        %vm1265 = vcmp.ne.s32.totalorder %v1201, 0
        %vm1266 = vcmp.ne.s32.totalorder %v1202, 0
        %vm1267 = vcmp.ne.s32.totalorder %v1203, 0
        %vm1268 = vcmp.ne.s32.totalorder %v1204, 0
        %vm1269 = vcmp.ne.s32.totalorder %v1205, 0
        %vm1270 = vcmp.ne.s32.totalorder %v1206, 0
        %vm1271 = vcmp.ne.s32.totalorder %v1207, 0
        %vm1272 = vcmp.ne.s32.totalorder %v1208, 0
        %vm1273 = vcmp.ne.s32.totalorder %v1209, 0
        %vm1274 = vcmp.ne.s32.totalorder %v1210, 0
        %vm1275 = vcmp.ne.s32.totalorder %v1211, 0
        %vm1276 = vcmp.ne.s32.totalorder %v1212, 0
        %vm1277 = vcmp.ne.s32.totalorder %v1213, 0
        %vm1278 = vcmp.ne.s32.totalorder %v1214, 0
        %vm1279 = vcmp.ne.s32.totalorder %v1215, 0
        %vm1280 = vcmp.ne.s32.totalorder %v1216, 0
        %vm1281 = vcmp.ne.s32.totalorder %v1217, 0
        %vm1282 = vcmp.ne.s32.totalorder %v1218, 0
        %vm1283 = vcmp.ne.s32.totalorder %v1219, 0
        %vm1284 = vcmp.ne.s32.totalorder %v1220, 0
        %vm1285 = vcmp.ne.s32.totalorder %v1221, 0
        %vm1286 = vcmp.ne.s32.totalorder %v1222, 0
        %vm1287 = vcmp.ne.s32.totalorder %v1223, 0
        %vm1288 = vcmp.ne.s32.totalorder %v1224, 0
        %vm1289 = vcmp.ne.s32.totalorder %v1225, 0
        %vm1290 = vcmp.ne.s32.totalorder %v1226, 0
        %vm1291 = vcmp.ne.s32.totalorder %v1227, 0
        %vm1292 = vcmp.ne.s32.totalorder %v1228, 0
        %vm1293 = vcmp.ne.s32.totalorder %v1229, 0
        %vm1294 = vcmp.ne.s32.totalorder %v1230, 0
        %vm1295 = vcmp.ne.s32.totalorder %v1231, 0
        %vm1296 = vcmp.ne.s32.totalorder %v1232, 0
        %vm1297 = vcmp.ne.s32.totalorder %v1233, 0
        %vm1298 = vcmp.ne.s32.totalorder %v1234, 0
        %vm1299 = vcmp.ne.s32.totalorder %v1235, 0
        %vm1300 = vcmp.ne.s32.totalorder %v1236, 0
        %vm1301 = vcmp.ne.s32.totalorder %v1237, 0
        %vm1302 = vcmp.ne.s32.totalorder %v1238, 0
        %vm1303 = vcmp.ne.s32.totalorder %v1239, 0
        %vm1304 = vcmp.ne.s32.totalorder %v1240, 0
        %vm1305 = vcmp.ne.s32.totalorder %v1241, 0
        %vm1306 = vcmp.ne.s32.totalorder %v1242, 0
        %vm1307 = vcmp.ne.s32.totalorder %v1243, 0
        %vm1308 = vcmp.ne.s32.totalorder %v1244, 0
        %vm1309 = vcmp.ne.s32.totalorder %v1245, 0
        %vm1310 = vcmp.ne.s32.totalorder %v1246, 0
        %vm1311 = vcmp.ne.s32.totalorder %v1247, 0
        %vm1312 = vcmp.ne.s32.totalorder %v1248, 0
        %vm1313 = vcmp.ne.s32.totalorder %v1249, 0
        %vm1314 = vcmp.ne.s32.totalorder %v1250, 0
        %vm1315 = vcmp.ne.s32.totalorder %v1251, 0
        %vm1316 = vcmp.ne.s32.totalorder %v1252, 0
        %vm1317 = vcmp.ne.s32.totalorder %v1253, 0
        %vm1318 = vcmp.ne.s32.totalorder %v1254, 0
        %vm1319 = vcmp.ne.s32.totalorder %v1255, 0
        %vm1320 = vcmp.ne.s32.totalorder %v1256, 0
        %vm1321 = vcmp.ne.s32.totalorder %v1257, 0
        %v1322 = vsel %vm1258, -1e+09, %v796
        %v1323 = vsel %vm1259, -1e+09, %v798
        %v1324 = vsel %vm1260, -1e+09, %v800
        %v1325 = vsel %vm1261, -1e+09, %v802
        %v1326 = vsel %vm1262, -1e+09, %v806
        %v1327 = vsel %vm1263, -1e+09, %v808
        %v1328 = vsel %vm1264, -1e+09, %v810
        %v1329 = vsel %vm1265, -1e+09, %v812
        %v1330 = vsel %vm1266, -1e+09, %v816
        %v1331 = vsel %vm1267, -1e+09, %v818
        %v1332 = vsel %vm1268, -1e+09, %v820
        %v1333 = vsel %vm1269, -1e+09, %v822
        %v1334 = vsel %vm1270, -1e+09, %v826
        %v1335 = vsel %vm1271, -1e+09, %v828
        %v1336 = vsel %vm1272, -1e+09, %v830
        %v1337 = vsel %vm1273, -1e+09, %v832
        %v1338 = vsel %vm1274, -1e+09, %v836
        %v1339 = vsel %vm1275, -1e+09, %v838
        %v1340 = vsel %vm1276, -1e+09, %v840
        %v1341 = vsel %vm1277, -1e+09, %v842
        %v1342 = vsel %vm1278, -1e+09, %v846
        %v1343 = vsel %vm1279, -1e+09, %v848
        %v1344 = vsel %vm1280, -1e+09, %v850
        %v1345 = vsel %vm1281, -1e+09, %v852
        %v1346 = vsel %vm1282, -1e+09, %v856
        %v1347 = vsel %vm1283, -1e+09, %v858
        %v1348 = vsel %vm1284, -1e+09, %v860
        %v1349 = vsel %vm1285, -1e+09, %v862
        %v1350 = vsel %vm1286, -1e+09, %v866
        %v1351 = vsel %vm1287, -1e+09, %v868
        %v1352 = vsel %vm1288, -1e+09, %v870
        %v1353 = vsel %vm1289, -1e+09, %v872
        %v1354 = vsel %vm1290, -1e+09, %v876
        %v1355 = vsel %vm1291, -1e+09, %v878
        %v1356 = vsel %vm1292, -1e+09, %v880
        %v1357 = vsel %vm1293, -1e+09, %v882
        %v1358 = vsel %vm1294, -1e+09, %v886
        %v1359 = vsel %vm1295, -1e+09, %v888
        %v1360 = vsel %vm1296, -1e+09, %v890
        %v1361 = vsel %vm1297, -1e+09, %v892
        %v1362 = vsel %vm1298, -1e+09, %v896
        %v1363 = vsel %vm1299, -1e+09, %v898
        %v1364 = vsel %vm1300, -1e+09, %v900
        %v1365 = vsel %vm1301, -1e+09, %v902
        %v1366 = vsel %vm1302, -1e+09, %v906
        %v1367 = vsel %vm1303, -1e+09, %v908
        %v1368 = vsel %vm1304, -1e+09, %v910
        %v1369 = vsel %vm1305, -1e+09, %v912
        %v1370 = vsel %vm1306, -1e+09, %v916
        %v1371 = vsel %vm1307, -1e+09, %v918
        %v1372 = vsel %vm1308, -1e+09, %v920
        %v1373 = vsel %vm1309, -1e+09, %v922
        %v1374 = vsel %vm1310, -1e+09, %v926
        %v1375 = vsel %vm1311, -1e+09, %v928
        %v1376 = vsel %vm1312, -1e+09, %v930
        %v1377 = vsel %vm1313, -1e+09, %v932
        %v1378 = vsel %vm1314, -1e+09, %v936
        %v1379 = vsel %vm1315, -1e+09, %v938
        %v1380 = vsel %vm1316, -1e+09, %v940
        %v1381 = vsel %vm1317, -1e+09, %v942
        %v1382 = vsel %vm1318, -1e+09, %v946
        %v1383 = vsel %vm1319, -1e+09, %v948
        %v1384 = vsel %vm1320, -1e+09, %v950
        %v1385 = vsel %vm1321, -1e+09, %v952
        %v1386 = vmax.f32 %v1322, %v1323
        %1387 = vmax.xlane.f32.xlu0 %v1386
        %v1388 = vpop.xlane.xlu0 %1387
        %v1389 = vmax.f32 %v1324, %v1325
        %1390 = vmax.xlane.f32.xlu0 %v1389
        %v1391 = vpop.xlane.xlu0 %1390
        %v1392 = vmax.f32 %v1326, %v1327
        %1393 = vmax.xlane.f32.xlu0 %v1392
        %v1394 = vpop.xlane.xlu0 %1393
        %v1395 = vmax.f32 %v1328, %v1329
        %1396 = vmax.xlane.f32.xlu0 %v1395
        %v1397 = vpop.xlane.xlu0 %1396
        %v1398 = vmax.f32 %v1330, %v1331
        %1399 = vmax.xlane.f32.xlu0 %v1398
        %v1400 = vpop.xlane.xlu0 %1399
        %v1401 = vmax.f32 %v1332, %v1333
        %1402 = vmax.xlane.f32.xlu0 %v1401
        %v1403 = vpop.xlane.xlu0 %1402
        %v1404 = vmax.f32 %v1334, %v1335
        %1405 = vmax.xlane.f32.xlu0 %v1404
        %v1406 = vpop.xlane.xlu0 %1405
        %v1407 = vmax.f32 %v1336, %v1337
        %1408 = vmax.xlane.f32.xlu0 %v1407
        %v1409 = vpop.xlane.xlu0 %1408
        %v1410 = vmax.f32 %v1338, %v1339
        %1411 = vmax.xlane.f32.xlu0 %v1410
        %v1412 = vpop.xlane.xlu0 %1411
        %v1413 = vmax.f32 %v1340, %v1341
        %1414 = vmax.xlane.f32.xlu0 %v1413
        %v1415 = vpop.xlane.xlu0 %1414
        %v1416 = vmax.f32 %v1342, %v1343
        %1417 = vmax.xlane.f32.xlu0 %v1416
        %v1418 = vpop.xlane.xlu0 %1417
        %v1419 = vmax.f32 %v1344, %v1345
        %1420 = vmax.xlane.f32.xlu0 %v1419
        %v1421 = vpop.xlane.xlu0 %1420
        %v1422 = vmax.f32 %v1346, %v1347
        %1423 = vmax.xlane.f32.xlu0 %v1422
        %v1424 = vpop.xlane.xlu0 %1423
        %v1425 = vmax.f32 %v1348, %v1349
        %1426 = vmax.xlane.f32.xlu0 %v1425
        %v1427 = vpop.xlane.xlu0 %1426
        %v1428 = vmax.f32 %v1350, %v1351
        %1429 = vmax.xlane.f32.xlu0 %v1428
        %v1430 = vpop.xlane.xlu0 %1429
        %v1431 = vmax.f32 %v1352, %v1353
        %1432 = vmax.xlane.f32.xlu0 %v1431
        %v1433 = vpop.xlane.xlu0 %1432
        %v1434 = vmax.f32 %v1354, %v1355
        %1435 = vmax.xlane.f32.xlu0 %v1434
        %v1436 = vpop.xlane.xlu0 %1435
        %v1437 = vmax.f32 %v1356, %v1357
        %1438 = vmax.xlane.f32.xlu0 %v1437
        %v1439 = vpop.xlane.xlu0 %1438
        %v1440 = vmax.f32 %v1358, %v1359
        %1441 = vmax.xlane.f32.xlu0 %v1440
        %v1442 = vpop.xlane.xlu0 %1441
        %v1443 = vmax.f32 %v1360, %v1361
        %1444 = vmax.xlane.f32.xlu0 %v1443
        %v1445 = vpop.xlane.xlu0 %1444
        %v1446 = vmax.f32 %v1362, %v1363
        %1447 = vmax.xlane.f32.xlu0 %v1446
        %v1448 = vpop.xlane.xlu0 %1447
        %v1449 = vmax.f32 %v1364, %v1365
        %1450 = vmax.xlane.f32.xlu0 %v1449
        %v1451 = vpop.xlane.xlu0 %1450
        %v1452 = vmax.f32 %v1366, %v1367
        %1453 = vmax.xlane.f32.xlu0 %v1452
        %v1454 = vpop.xlane.xlu0 %1453
        %v1455 = vmax.f32 %v1368, %v1369
        %1456 = vmax.xlane.f32.xlu0 %v1455
        %v1457 = vpop.xlane.xlu0 %1456
        %v1458 = vmax.f32 %v1370, %v1371
        %1459 = vmax.xlane.f32.xlu0 %v1458
        %v1460 = vpop.xlane.xlu0 %1459
        %v1461 = vmax.f32 %v1372, %v1373
        %1462 = vmax.xlane.f32.xlu0 %v1461
        %v1463 = vpop.xlane.xlu0 %1462
        %v1464 = vmax.f32 %v1374, %v1375
        %1465 = vmax.xlane.f32.xlu0 %v1464
        %v1466 = vpop.xlane.xlu0 %1465
        %v1467 = vmax.f32 %v1376, %v1377
        %1468 = vmax.xlane.f32.xlu0 %v1467
        %v1469 = vpop.xlane.xlu0 %1468
        %v1470 = vmax.f32 %v1378, %v1379
        %1471 = vmax.xlane.f32.xlu0 %v1470
        %v1472 = vpop.xlane.xlu0 %1471
        %v1473 = vmax.f32 %v1380, %v1381
        %1474 = vmax.xlane.f32.xlu0 %v1473
        %v1475 = vpop.xlane.xlu0 %1474
        %v1476 = vmax.f32 %v1382, %v1383
        %1477 = vmax.xlane.f32.xlu0 %v1476
        %v1478 = vpop.xlane.xlu0 %1477
        %v1479 = vmax.f32 %v1384, %v1385
        %1480 = vmax.xlane.f32.xlu0 %v1479
        %v1481 = vpop.xlane.xlu0 %1480
        %v1482 = vsub.f32 %v1322, %v1388
        %v1483 = vsub.f32 %v1323, %v1388
        %v1484 = vsub.f32 %v1324, %v1391
        %v1485 = vsub.f32 %v1325, %v1391
        %v1486 = vsub.f32 %v1326, %v1394
        %v1487 = vsub.f32 %v1327, %v1394
        %v1488 = vsub.f32 %v1328, %v1397
        %v1489 = vsub.f32 %v1329, %v1397
        %v1490 = vsub.f32 %v1330, %v1400
        %v1491 = vsub.f32 %v1331, %v1400
        %v1492 = vsub.f32 %v1332, %v1403
        %v1493 = vsub.f32 %v1333, %v1403
        %v1494 = vsub.f32 %v1334, %v1406
        %v1495 = vsub.f32 %v1335, %v1406
        %v1496 = vsub.f32 %v1336, %v1409
        %v1497 = vsub.f32 %v1337, %v1409
        %v1498 = vsub.f32 %v1338, %v1412
        %v1499 = vsub.f32 %v1339, %v1412
        %v1500 = vsub.f32 %v1340, %v1415
        %v1501 = vsub.f32 %v1341, %v1415
        %v1502 = vsub.f32 %v1342, %v1418
        %v1503 = vsub.f32 %v1343, %v1418
        %v1504 = vsub.f32 %v1344, %v1421
        %v1505 = vsub.f32 %v1345, %v1421
        %v1506 = vsub.f32 %v1346, %v1424
        %v1507 = vsub.f32 %v1347, %v1424
        %v1508 = vsub.f32 %v1348, %v1427
        %v1509 = vsub.f32 %v1349, %v1427
        %v1510 = vsub.f32 %v1350, %v1430
        %v1511 = vsub.f32 %v1351, %v1430
        %v1512 = vsub.f32 %v1352, %v1433
        %v1513 = vsub.f32 %v1353, %v1433
        %v1514 = vsub.f32 %v1354, %v1436
        %v1515 = vsub.f32 %v1355, %v1436
        %v1516 = vsub.f32 %v1356, %v1439
        %v1517 = vsub.f32 %v1357, %v1439
        %v1518 = vsub.f32 %v1358, %v1442
        %v1519 = vsub.f32 %v1359, %v1442
        %v1520 = vsub.f32 %v1360, %v1445
        %v1521 = vsub.f32 %v1361, %v1445
        %v1522 = vsub.f32 %v1362, %v1448
        %v1523 = vsub.f32 %v1363, %v1448
        %v1524 = vsub.f32 %v1364, %v1451
        %v1525 = vsub.f32 %v1365, %v1451
        %v1526 = vsub.f32 %v1366, %v1454
        %v1527 = vsub.f32 %v1367, %v1454
        %v1528 = vsub.f32 %v1368, %v1457
        %v1529 = vsub.f32 %v1369, %v1457
        %v1530 = vsub.f32 %v1370, %v1460
        %v1531 = vsub.f32 %v1371, %v1460
        %v1532 = vsub.f32 %v1372, %v1463
        %v1533 = vsub.f32 %v1373, %v1463
        %v1534 = vsub.f32 %v1374, %v1466
        %v1535 = vsub.f32 %v1375, %v1466
        %v1536 = vsub.f32 %v1376, %v1469
        %v1537 = vsub.f32 %v1377, %v1469
        %v1538 = vsub.f32 %v1378, %v1472
        %v1539 = vsub.f32 %v1379, %v1472
        %v1540 = vsub.f32 %v1380, %v1475
        %v1541 = vsub.f32 %v1381, %v1475
        %v1542 = vsub.f32 %v1382, %v1478
        %v1543 = vsub.f32 %v1383, %v1478
        %v1544 = vsub.f32 %v1384, %v1481
        %v1545 = vsub.f32 %v1385, %v1481
        %v1546 = vmul.f32 %v1482, 1.442695
        %v1547 = vpow.pop %v1546
        %v1548 = vmul.f32 %v1483, 1.442695
        %v1549 = vpow.pop %v1548
        %v1550 = vmul.f32 %v1484, 1.442695
        %v1551 = vpow.pop %v1550
        %v1552 = vmul.f32 %v1485, 1.442695
        %v1553 = vpow.pop %v1552
        %v1554 = vmul.f32 %v1486, 1.442695
        %v1555 = vpow.pop %v1554
        %v1556 = vmul.f32 %v1487, 1.442695
        %v1557 = vpow.pop %v1556
        %v1558 = vmul.f32 %v1488, 1.442695
        %v1559 = vpow.pop %v1558
        %v1560 = vmul.f32 %v1489, 1.442695
        %v1561 = vpow.pop %v1560
        %v1562 = vmul.f32 %v1490, 1.442695
        %v1563 = vpow.pop %v1562
        %v1564 = vmul.f32 %v1491, 1.442695
        %v1565 = vpow.pop %v1564
        %v1566 = vmul.f32 %v1492, 1.442695
        %v1567 = vpow.pop %v1566
        %v1568 = vmul.f32 %v1493, 1.442695
        %v1569 = vpow.pop %v1568
        %v1570 = vmul.f32 %v1494, 1.442695
        %v1571 = vpow.pop %v1570
        %v1572 = vmul.f32 %v1495, 1.442695
        %v1573 = vpow.pop %v1572
        %v1574 = vmul.f32 %v1496, 1.442695
        %v1575 = vpow.pop %v1574
        %v1576 = vmul.f32 %v1497, 1.442695
        %v1577 = vpow.pop %v1576
        %v1578 = vmul.f32 %v1498, 1.442695
        %v1579 = vpow.pop %v1578
        %v1580 = vmul.f32 %v1499, 1.442695
        %v1581 = vpow.pop %v1580
        %v1582 = vmul.f32 %v1500, 1.442695
        %v1583 = vpow.pop %v1582
        %v1584 = vmul.f32 %v1501, 1.442695
        %v1585 = vpow.pop %v1584
        %v1586 = vmul.f32 %v1502, 1.442695
        %v1587 = vpow.pop %v1586
        %v1588 = vmul.f32 %v1503, 1.442695
        %v1589 = vpow.pop %v1588
        %v1590 = vmul.f32 %v1504, 1.442695
        %v1591 = vpow.pop %v1590
        %v1592 = vmul.f32 %v1505, 1.442695
        %v1593 = vpow.pop %v1592
        %v1594 = vmul.f32 %v1506, 1.442695
        %v1595 = vpow.pop %v1594
        %v1596 = vmul.f32 %v1507, 1.442695
        %v1597 = vpow.pop %v1596
        %v1598 = vmul.f32 %v1508, 1.442695
        %v1599 = vpow.pop %v1598
        %v1600 = vmul.f32 %v1509, 1.442695
        %v1601 = vpow.pop %v1600
        %v1602 = vmul.f32 %v1510, 1.442695
        %v1603 = vpow.pop %v1602
        %v1604 = vmul.f32 %v1511, 1.442695
        %v1605 = vpow.pop %v1604
        %v1606 = vmul.f32 %v1512, 1.442695
        %v1607 = vpow.pop %v1606
        %v1608 = vmul.f32 %v1513, 1.442695
        %v1609 = vpow.pop %v1608
        %v1610 = vmul.f32 %v1514, 1.442695
        %v1611 = vpow.pop %v1610
        %v1612 = vmul.f32 %v1515, 1.442695
        %v1613 = vpow.pop %v1612
        %v1614 = vmul.f32 %v1516, 1.442695
        %v1615 = vpow.pop %v1614
        %v1616 = vmul.f32 %v1517, 1.442695
        %v1617 = vpow.pop %v1616
        %v1618 = vmul.f32 %v1518, 1.442695
        %v1619 = vpow.pop %v1618
        %v1620 = vmul.f32 %v1519, 1.442695
        %v1621 = vpow.pop %v1620
        %v1622 = vmul.f32 %v1520, 1.442695
        %v1623 = vpow.pop %v1622
        %v1624 = vmul.f32 %v1521, 1.442695
        %v1625 = vpow.pop %v1624
        %v1626 = vmul.f32 %v1522, 1.442695
        %v1627 = vpow.pop %v1626
        %v1628 = vmul.f32 %v1523, 1.442695
        %v1629 = vpow.pop %v1628
        %v1630 = vmul.f32 %v1524, 1.442695
        %v1631 = vpow.pop %v1630
        %v1632 = vmul.f32 %v1525, 1.442695
        %v1633 = vpow.pop %v1632
        %v1634 = vmul.f32 %v1526, 1.442695
        %v1635 = vpow.pop %v1634
        %v1636 = vmul.f32 %v1527, 1.442695
        %v1637 = vpow.pop %v1636
        %v1638 = vmul.f32 %v1528, 1.442695
        %v1639 = vpow.pop %v1638
        %v1640 = vmul.f32 %v1529, 1.442695
        %v1641 = vpow.pop %v1640
        %v1642 = vmul.f32 %v1530, 1.442695
        %v1643 = vpow.pop %v1642
        %v1644 = vmul.f32 %v1531, 1.442695
        %v1645 = vpow.pop %v1644
        %v1646 = vmul.f32 %v1532, 1.442695
        %v1647 = vpow.pop %v1646
        %v1648 = vmul.f32 %v1533, 1.442695
        %v1649 = vpow.pop %v1648
        %v1650 = vmul.f32 %v1534, 1.442695
        %v1651 = vpow.pop %v1650
        %v1652 = vmul.f32 %v1535, 1.442695
        %v1653 = vpow.pop %v1652
        %v1654 = vmul.f32 %v1536, 1.442695
        %v1655 = vpow.pop %v1654
        %v1656 = vmul.f32 %v1537, 1.442695
        %v1657 = vpow.pop %v1656
        %v1658 = vmul.f32 %v1538, 1.442695
        %v1659 = vpow.pop %v1658
        %v1660 = vmul.f32 %v1539, 1.442695
        %v1661 = vpow.pop %v1660
        %v1662 = vmul.f32 %v1540, 1.442695
        %v1663 = vpow.pop %v1662
        %v1664 = vmul.f32 %v1541, 1.442695
        %v1665 = vpow.pop %v1664
        %v1666 = vmul.f32 %v1542, 1.442695
        %v1667 = vpow.pop %v1666
        %v1668 = vmul.f32 %v1543, 1.442695
        %v1669 = vpow.pop %v1668
        %v1670 = vmul.f32 %v1544, 1.442695
        %v1671 = vpow.pop %v1670
        %v1672 = vmul.f32 %v1545, 1.442695
        %v1673 = vpow.pop %v1672
        %v1674 = vadd.f32 %v1547, %v1549
        %1675 = vadd.xlane.f32.xlu0 %v1674
        %v1676 = vpop.xlane.xlu0 %1675
        %v1677 = vadd.f32 %v1551, %v1553
        %1678 = vadd.xlane.f32.xlu0 %v1677
        %v1679 = vpop.xlane.xlu0 %1678
        %v1680 = vadd.f32 %v1555, %v1557
        %1681 = vadd.xlane.f32.xlu0 %v1680
        %v1682 = vpop.xlane.xlu0 %1681
        %v1683 = vadd.f32 %v1559, %v1561
        %1684 = vadd.xlane.f32.xlu0 %v1683
        %v1685 = vpop.xlane.xlu0 %1684
        %v1686 = vadd.f32 %v1563, %v1565
        %1687 = vadd.xlane.f32.xlu0 %v1686
        %v1688 = vpop.xlane.xlu0 %1687
        %v1689 = vadd.f32 %v1567, %v1569
        %1690 = vadd.xlane.f32.xlu0 %v1689
        %v1691 = vpop.xlane.xlu0 %1690
        %v1692 = vadd.f32 %v1571, %v1573
        %1693 = vadd.xlane.f32.xlu0 %v1692
        %v1694 = vpop.xlane.xlu0 %1693
        %v1695 = vadd.f32 %v1575, %v1577
        %1696 = vadd.xlane.f32.xlu0 %v1695
        %v1697 = vpop.xlane.xlu0 %1696
        %v1698 = vadd.f32 %v1579, %v1581
        %1699 = vadd.xlane.f32.xlu0 %v1698
        %v1700 = vpop.xlane.xlu0 %1699
        %v1701 = vadd.f32 %v1583, %v1585
        %1702 = vadd.xlane.f32.xlu0 %v1701
        %v1703 = vpop.xlane.xlu0 %1702
        %v1704 = vadd.f32 %v1587, %v1589
        %1705 = vadd.xlane.f32.xlu0 %v1704
        %v1706 = vpop.xlane.xlu0 %1705
        %v1707 = vadd.f32 %v1591, %v1593
        %1708 = vadd.xlane.f32.xlu0 %v1707
        %v1709 = vpop.xlane.xlu0 %1708
        %v1710 = vadd.f32 %v1595, %v1597
        %1711 = vadd.xlane.f32.xlu0 %v1710
        %v1712 = vpop.xlane.xlu0 %1711
        %v1713 = vadd.f32 %v1599, %v1601
        %1714 = vadd.xlane.f32.xlu0 %v1713
        %v1715 = vpop.xlane.xlu0 %1714
        %v1716 = vadd.f32 %v1603, %v1605
        %1717 = vadd.xlane.f32.xlu0 %v1716
        %v1718 = vpop.xlane.xlu0 %1717
        %v1719 = vadd.f32 %v1607, %v1609
        %1720 = vadd.xlane.f32.xlu0 %v1719
        %v1721 = vpop.xlane.xlu0 %1720
        %v1722 = vadd.f32 %v1611, %v1613
        %1723 = vadd.xlane.f32.xlu0 %v1722
        %v1724 = vpop.xlane.xlu0 %1723
        %v1725 = vadd.f32 %v1615, %v1617
        %1726 = vadd.xlane.f32.xlu0 %v1725
        %v1727 = vpop.xlane.xlu0 %1726
        %v1728 = vadd.f32 %v1619, %v1621
        %1729 = vadd.xlane.f32.xlu0 %v1728
        %v1730 = vpop.xlane.xlu0 %1729
        %v1731 = vadd.f32 %v1623, %v1625
        %1732 = vadd.xlane.f32.xlu0 %v1731
        %v1733 = vpop.xlane.xlu0 %1732
        %v1734 = vadd.f32 %v1627, %v1629
        %1735 = vadd.xlane.f32.xlu0 %v1734
        %v1736 = vpop.xlane.xlu0 %1735
        %v1737 = vadd.f32 %v1631, %v1633
        %1738 = vadd.xlane.f32.xlu0 %v1737
        %v1739 = vpop.xlane.xlu0 %1738
        %v1740 = vadd.f32 %v1635, %v1637
        %1741 = vadd.xlane.f32.xlu0 %v1740
        %v1742 = vpop.xlane.xlu0 %1741
        %v1743 = vadd.f32 %v1639, %v1641
        %1744 = vadd.xlane.f32.xlu0 %v1743
        %v1745 = vpop.xlane.xlu0 %1744
        %v1746 = vadd.f32 %v1643, %v1645
        %1747 = vadd.xlane.f32.xlu0 %v1746
        %v1748 = vpop.xlane.xlu0 %1747
        %v1749 = vadd.f32 %v1647, %v1649
        %1750 = vadd.xlane.f32.xlu0 %v1749
        %v1751 = vpop.xlane.xlu0 %1750
        %v1752 = vadd.f32 %v1651, %v1653
        %1753 = vadd.xlane.f32.xlu0 %v1752
        %v1754 = vpop.xlane.xlu0 %1753
        %v1755 = vadd.f32 %v1655, %v1657
        %1756 = vadd.xlane.f32.xlu0 %v1755
        %v1757 = vpop.xlane.xlu0 %1756
        %v1758 = vadd.f32 %v1659, %v1661
        %1759 = vadd.xlane.f32.xlu0 %v1758
        %v1760 = vpop.xlane.xlu0 %1759
        %v1761 = vadd.f32 %v1663, %v1665
        %1762 = vadd.xlane.f32.xlu0 %v1761
        %v1763 = vpop.xlane.xlu0 %1762
        %v1764 = vadd.f32 %v1667, %v1669
        %1765 = vadd.xlane.f32.xlu0 %v1764
        %v1766 = vpop.xlane.xlu0 %1765
        %v1767 = vadd.f32 %v1671, %v1673
        %1768 = vadd.xlane.f32.xlu0 %v1767
        %v1769 = vpop.xlane.xlu0 %1768
        %v1770 = vrcp.pop %v1676
        %v1771 = vmul.f32 %v1547, %v1770
        %v1772 = vmul.f32 %v1549, %v1770
        %v1773 = vrcp.pop %v1679
        %v1774 = vmul.f32 %v1551, %v1773
        %v1775 = vmul.f32 %v1553, %v1773
        %v1776 = vrcp.pop %v1682
        %v1777 = vmul.f32 %v1555, %v1776
        %v1778 = vmul.f32 %v1557, %v1776
        %v1779 = vrcp.pop %v1685
        %v1780 = vmul.f32 %v1559, %v1779
        %v1781 = vmul.f32 %v1561, %v1779
        %v1782 = vrcp.pop %v1688
        %v1783 = vmul.f32 %v1563, %v1782
        %v1784 = vmul.f32 %v1565, %v1782
        %v1785 = vrcp.pop %v1691
        %v1786 = vmul.f32 %v1567, %v1785
        %v1787 = vmul.f32 %v1569, %v1785
        %v1788 = vrcp.pop %v1694
        %v1789 = vmul.f32 %v1571, %v1788
        %v1790 = vmul.f32 %v1573, %v1788
        %v1791 = vrcp.pop %v1697
        %v1792 = vmul.f32 %v1575, %v1791
        %v1793 = vmul.f32 %v1577, %v1791
        %v1794 = vrcp.pop %v1700
        %v1795 = vmul.f32 %v1579, %v1794
        %v1796 = vmul.f32 %v1581, %v1794
        %v1797 = vrcp.pop %v1703
        %v1798 = vmul.f32 %v1583, %v1797
        %v1799 = vmul.f32 %v1585, %v1797
        %v1800 = vrcp.pop %v1706
        %v1801 = vmul.f32 %v1587, %v1800
        %v1802 = vmul.f32 %v1589, %v1800
        %v1803 = vrcp.pop %v1709
        %v1804 = vmul.f32 %v1591, %v1803
        %v1805 = vmul.f32 %v1593, %v1803
        %v1806 = vrcp.pop %v1712
        %v1807 = vmul.f32 %v1595, %v1806
        %v1808 = vmul.f32 %v1597, %v1806
        %v1809 = vrcp.pop %v1715
        %v1810 = vmul.f32 %v1599, %v1809
        %v1811 = vmul.f32 %v1601, %v1809
        %v1812 = vrcp.pop %v1718
        %v1813 = vmul.f32 %v1603, %v1812
        %v1814 = vmul.f32 %v1605, %v1812
        %v1815 = vrcp.pop %v1721
        %v1816 = vmul.f32 %v1607, %v1815
        %v1817 = vmul.f32 %v1609, %v1815
        %v1818 = vrcp.pop %v1724
        %v1819 = vmul.f32 %v1611, %v1818
        %v1820 = vmul.f32 %v1613, %v1818
        %v1821 = vrcp.pop %v1727
        %v1822 = vmul.f32 %v1615, %v1821
        %v1823 = vmul.f32 %v1617, %v1821
        %v1824 = vrcp.pop %v1730
        %v1825 = vmul.f32 %v1619, %v1824
        %v1826 = vmul.f32 %v1621, %v1824
        %v1827 = vrcp.pop %v1733
        %v1828 = vmul.f32 %v1623, %v1827
        %v1829 = vmul.f32 %v1625, %v1827
        %v1830 = vrcp.pop %v1736
        %v1831 = vmul.f32 %v1627, %v1830
        %v1832 = vmul.f32 %v1629, %v1830
        %v1833 = vrcp.pop %v1739
        %v1834 = vmul.f32 %v1631, %v1833
        %v1835 = vmul.f32 %v1633, %v1833
        %v1836 = vrcp.pop %v1742
        %v1837 = vmul.f32 %v1635, %v1836
        %v1838 = vmul.f32 %v1637, %v1836
        %v1839 = vrcp.pop %v1745
        %v1840 = vmul.f32 %v1639, %v1839
        %v1841 = vmul.f32 %v1641, %v1839
        %v1842 = vrcp.pop %v1748
        %v1843 = vmul.f32 %v1643, %v1842
        %v1844 = vmul.f32 %v1645, %v1842
        %v1845 = vrcp.pop %v1751
        %v1846 = vmul.f32 %v1647, %v1845
        %v1847 = vmul.f32 %v1649, %v1845
        %v1848 = vrcp.pop %v1754
        %v1849 = vmul.f32 %v1651, %v1848
        %v1850 = vmul.f32 %v1653, %v1848
        %v1851 = vrcp.pop %v1757
        %v1852 = vmul.f32 %v1655, %v1851
        %v1853 = vmul.f32 %v1657, %v1851
        %v1854 = vrcp.pop %v1760
        %v1855 = vmul.f32 %v1659, %v1854
        %v1856 = vmul.f32 %v1661, %v1854
        %v1857 = vrcp.pop %v1763
        %v1858 = vmul.f32 %v1663, %v1857
        %v1859 = vmul.f32 %v1665, %v1857
        %v1860 = vrcp.pop %v1766
        %v1861 = vmul.f32 %v1667, %v1860
        %v1862 = vmul.f32 %v1669, %v1860
        %v1863 = vrcp.pop %v1769
        %v1864 = vmul.f32 %v1671, %v1863
        %v1865 = vmul.f32 %v1673, %v1863
        %v1866 = vpack.c.bf16 %v1774, %v1771
        %v1867 = vpack.c.bf16 %v1775, %v1772
        %v1868 = vpack.c.bf16 %v1780, %v1777
        %v1869 = vpack.c.bf16 %v1781, %v1778
        %v1870 = vpack.c.bf16 %v1786, %v1783
        %v1871 = vpack.c.bf16 %v1787, %v1784
        %v1872 = vpack.c.bf16 %v1792, %v1789
        %v1873 = vpack.c.bf16 %v1793, %v1790
        %v1874 = vpack.c.bf16 %v1798, %v1795
        %v1875 = vpack.c.bf16 %v1799, %v1796
        %v1876 = vpack.c.bf16 %v1804, %v1801
        %v1877 = vpack.c.bf16 %v1805, %v1802
        %v1878 = vpack.c.bf16 %v1810, %v1807
        %v1879 = vpack.c.bf16 %v1811, %v1808
        %v1880 = vpack.c.bf16 %v1816, %v1813
        %v1881 = vpack.c.bf16 %v1817, %v1814
        %v1882 = vpack.c.bf16 %v1822, %v1819
        %v1883 = vpack.c.bf16 %v1823, %v1820
        %v1884 = vpack.c.bf16 %v1828, %v1825
        %v1885 = vpack.c.bf16 %v1829, %v1826
        %v1886 = vpack.c.bf16 %v1834, %v1831
        %v1887 = vpack.c.bf16 %v1835, %v1832
        %v1888 = vpack.c.bf16 %v1840, %v1837
        %v1889 = vpack.c.bf16 %v1841, %v1838
        %v1890 = vpack.c.bf16 %v1846, %v1843
        %v1891 = vpack.c.bf16 %v1847, %v1844
        %v1892 = vpack.c.bf16 %v1852, %v1849
        %v1893 = vpack.c.bf16 %v1853, %v1850
        %v1894 = vpack.c.bf16 %v1858, %v1855
        %v1895 = vpack.c.bf16 %v1859, %v1856
        %v1896 = vpack.c.bf16 %v1864, %v1861
        %v1897 = vpack.c.bf16 %v1865, %v1862
        %v1898 = vld [vmem:[#allocation3] sm:$0xff]
        %v1899 = vld [vmem:[#allocation3 + $0x8] sm:$0xff]
        %v1900 = vld [vmem:[#allocation3 + $0x10] sm:$0xff]
        %v1901 = vld [vmem:[#allocation3 + $0x18] sm:$0xff]
        %v1902 = vld [vmem:[#allocation3 + $0x20] sm:$0xff]
        %v1903 = vld [vmem:[#allocation3 + $0x28] sm:$0xff]
        %v1904 = vld [vmem:[#allocation3 + $0x30] sm:$0xff]
        %v1905 = vld [vmem:[#allocation3 + $0x38] sm:$0xff]
        %v1906 = vld [vmem:[#allocation3 + $0x40] sm:$0xff]
        %v1907 = vld [vmem:[#allocation3 + $0x48] sm:$0xff]
        %v1908 = vld [vmem:[#allocation3 + $0x50] sm:$0xff]
        %v1909 = vld [vmem:[#allocation3 + $0x58] sm:$0xff]
        %v1910 = vld [vmem:[#allocation3 + $0x60] sm:$0xff]
        %v1911 = vld [vmem:[#allocation3 + $0x68] sm:$0xff]
        %v1912 = vld [vmem:[#allocation3 + $0x70] sm:$0xff]
        %v1913 = vld [vmem:[#allocation3 + $0x78] sm:$0xff]
        %1914 = vmatprep.subr.bf16.mxu0 0
        %1915 = vmatpush1.bf16.msra.mxu0 %v1898
        %1916 = vmatprep.subr.bf16.mxu0 0
        %1917 = vmatpush1.bf16.msra.mxu0 %v1899
        %1918 = vmatprep.subr.bf16.mxu0 0
        %1919 = vmatpush1.bf16.msra.mxu0 %v1900
        %1920 = vmatprep.subr.bf16.mxu0 0
        %1921 = vmatpush1.bf16.msra.mxu0 %v1901
        %1922 = vmatprep.subr.bf16.mxu0 0
        %1923 = vmatpush1.bf16.msra.mxu0 %v1902
        %1924 = vmatprep.subr.bf16.mxu0 0
        %1925 = vmatpush1.bf16.msra.mxu0 %v1903
        %1926 = vmatprep.subr.bf16.mxu0 0
        %1927 = vmatpush1.bf16.msra.mxu0 %v1904
        %1928 = vmatprep.subr.bf16.mxu0 0
        %1929 = vmatpush1.bf16.msra.mxu0 %v1905
        %1930 = vmatprep.subr.bf16.mxu0 0
        %1931 = vmatpush1.bf16.msra.mxu0 %v1906
        %1932 = vmatprep.subr.bf16.mxu0 0
        %1933 = vmatpush1.bf16.msra.mxu0 %v1907
        %1934 = vmatprep.subr.bf16.mxu0 0
        %1935 = vmatpush1.bf16.msra.mxu0 %v1908
        %1936 = vmatprep.subr.bf16.mxu0 0
        %1937 = vmatpush1.bf16.msra.mxu0 %v1909
        %1938 = vmatprep.subr.bf16.mxu0 0
        %1939 = vmatpush1.bf16.msra.mxu0 %v1910
        %1940 = vmatprep.subr.bf16.mxu0 0
        %1941 = vmatpush1.bf16.msra.mxu0 %v1911
        %1942 = vmatprep.subr.bf16.mxu0 0
        %1943 = vmatpush1.bf16.msra.mxu0 %v1912
        %1944 = vmatprep.subr.bf16.mxu0 0
        %1945 = vmatpush1.bf16.msra.mxu0 %v1913
        %1946 = vmatprep.mubr.bf16.mxu0 %v1867
        %1947 = vmatmul.mubr.bf16.gmra.mrb[0].mxu0 %v1866
        %v1948 = vpop.f32.mrb[0].mxu0
        %v1949 = vadd.f32 0.0, %v1948
        %v1950 = vpop.f32.mrb[0].mxu0
        %v1951 = vpop.f32.mrb[0].mxu0
        %v1952 = vadd.f32 0.0, %v1951
        %v1953 = vpop.f32.mrb[0].mxu0
        %1954 = vmatprep.mubr.bf16.mxu0 %v1869
        %1955 = vmatmul.mubr.bf16.gmra.mrb[0].mxu0 %v1868
        %v1956 = vpop.f32.mrb[0].mxu0
        %v1957 = vadd.f32 0.0, %v1956
        %v1958 = vpop.f32.mrb[0].mxu0
        %v1959 = vpop.f32.mrb[0].mxu0
        %v1960 = vadd.f32 0.0, %v1959
        %v1961 = vpop.f32.mrb[0].mxu0
        %1962 = vmatprep.mubr.bf16.mxu0 %v1871
        %1963 = vmatmul.mubr.bf16.gmra.mrb[0].mxu0 %v1870
        %v1964 = vpop.f32.mrb[0].mxu0
        %v1965 = vadd.f32 0.0, %v1964
        %v1966 = vpop.f32.mrb[0].mxu0
        %v1967 = vpop.f32.mrb[0].mxu0
        %v1968 = vadd.f32 0.0, %v1967
        %v1969 = vpop.f32.mrb[0].mxu0
        %1970 = vmatprep.mubr.bf16.mxu0 %v1873
        %1971 = vmatmul.mubr.bf16.gmra.mrb[0].mxu0 %v1872
        %v1972 = vpop.f32.mrb[0].mxu0
        %v1973 = vadd.f32 0.0, %v1972
        %v1974 = vpop.f32.mrb[0].mxu0
        %v1975 = vpop.f32.mrb[0].mxu0
        %v1976 = vadd.f32 0.0, %v1975
        %v1977 = vpop.f32.mrb[0].mxu0
        %1978 = vmatprep.mubr.bf16.mxu0 %v1875
        %1979 = vmatmul.mubr.bf16.gmra.mrb[0].mxu0 %v1874
        %v1980 = vpop.f32.mrb[0].mxu0
        %v1981 = vadd.f32 0.0, %v1980
        %v1982 = vpop.f32.mrb[0].mxu0
        %v1983 = vpop.f32.mrb[0].mxu0
        %v1984 = vadd.f32 0.0, %v1983
        %v1985 = vpop.f32.mrb[0].mxu0
        %1986 = vmatprep.mubr.bf16.mxu0 %v1877
        %1987 = vmatmul.mubr.bf16.gmra.mrb[0].mxu0 %v1876
        %v1988 = vpop.f32.mrb[0].mxu0
        %v1989 = vadd.f32 0.0, %v1988
        %v1990 = vpop.f32.mrb[0].mxu0
        %v1991 = vpop.f32.mrb[0].mxu0
        %v1992 = vadd.f32 0.0, %v1991
        %v1993 = vpop.f32.mrb[0].mxu0
        %1994 = vmatprep.mubr.bf16.mxu0 %v1879
        %1995 = vmatmul.mubr.bf16.gmra.mrb[0].mxu0 %v1878
        %v1996 = vpop.f32.mrb[0].mxu0
        %v1997 = vadd.f32 0.0, %v1996
        %v1998 = vpop.f32.mrb[0].mxu0
        %v1999 = vpop.f32.mrb[0].mxu0
        %v2000 = vadd.f32 0.0, %v1999
        %v2001 = vpop.f32.mrb[0].mxu0
        %2002 = vmatprep.mubr.bf16.mxu0 %v1881
        %2003 = vmatmul.mubr.bf16.gmra.mrb[0].mxu0 %v1880
        %v2004 = vpop.f32.mrb[0].mxu0
        %v2005 = vadd.f32 0.0, %v2004
        %v2006 = vpop.f32.mrb[0].mxu0
        %v2007 = vpop.f32.mrb[0].mxu0
        %v2008 = vadd.f32 0.0, %v2007
        %v2009 = vpop.f32.mrb[0].mxu0
        %2010 = vmatprep.mubr.bf16.mxu0 %v1883
        %2011 = vmatmul.mubr.bf16.gmra.mrb[0].mxu0 %v1882
        %v2012 = vpop.f32.mrb[0].mxu0
        %v2013 = vadd.f32 0.0, %v2012
        %v2014 = vpop.f32.mrb[0].mxu0
        %v2015 = vpop.f32.mrb[0].mxu0
        %v2016 = vadd.f32 0.0, %v2015
        %v2017 = vpop.f32.mrb[0].mxu0
        %2018 = vmatprep.mubr.bf16.mxu0 %v1885
        %2019 = vmatmul.mubr.bf16.gmra.mrb[0].mxu0 %v1884
        %v2020 = vpop.f32.mrb[0].mxu0
        %v2021 = vadd.f32 0.0, %v2020
        %v2022 = vpop.f32.mrb[0].mxu0
        %v2023 = vpop.f32.mrb[0].mxu0
        %v2024 = vadd.f32 0.0, %v2023
        %v2025 = vpop.f32.mrb[0].mxu0
        %2026 = vmatprep.mubr.bf16.mxu0 %v1887
        %2027 = vmatmul.mubr.bf16.gmra.mrb[0].mxu0 %v1886
        %v2028 = vpop.f32.mrb[0].mxu0
        %v2029 = vadd.f32 0.0, %v2028
        %v2030 = vpop.f32.mrb[0].mxu0
        %v2031 = vpop.f32.mrb[0].mxu0
        %v2032 = vadd.f32 0.0, %v2031
        %v2033 = vpop.f32.mrb[0].mxu0
        %2034 = vmatprep.mubr.bf16.mxu0 %v1889
        %2035 = vmatmul.mubr.bf16.gmra.mrb[0].mxu0 %v1888
        %v2036 = vpop.f32.mrb[0].mxu0
        %v2037 = vadd.f32 0.0, %v2036
        %v2038 = vpop.f32.mrb[0].mxu0
        %v2039 = vpop.f32.mrb[0].mxu0
        %v2040 = vadd.f32 0.0, %v2039
        %v2041 = vpop.f32.mrb[0].mxu0
        %2042 = vmatprep.mubr.bf16.mxu0 %v1891
        %2043 = vmatmul.mubr.bf16.gmra.mrb[0].mxu0 %v1890
        %v2044 = vpop.f32.mrb[0].mxu0
        %v2045 = vadd.f32 0.0, %v2044
        %v2046 = vpop.f32.mrb[0].mxu0
        %v2047 = vpop.f32.mrb[0].mxu0
        %v2048 = vadd.f32 0.0, %v2047
        %v2049 = vpop.f32.mrb[0].mxu0
        %2050 = vmatprep.mubr.bf16.mxu0 %v1893
        %2051 = vmatmul.mubr.bf16.gmra.mrb[0].mxu0 %v1892
        %v2052 = vpop.f32.mrb[0].mxu0
        %v2053 = vadd.f32 0.0, %v2052
        %v2054 = vpop.f32.mrb[0].mxu0
        %v2055 = vpop.f32.mrb[0].mxu0
        %v2056 = vadd.f32 0.0, %v2055
        %v2057 = vpop.f32.mrb[0].mxu0
        %2058 = vmatprep.mubr.bf16.mxu0 %v1895
        %2059 = vmatmul.mubr.bf16.gmra.mrb[0].mxu0 %v1894
        %v2060 = vpop.f32.mrb[0].mxu0
        %v2061 = vadd.f32 0.0, %v2060
        %v2062 = vpop.f32.mrb[0].mxu0
        %v2063 = vpop.f32.mrb[0].mxu0
        %v2064 = vadd.f32 0.0, %v2063
        %v2065 = vpop.f32.mrb[0].mxu0
        %2066 = vmatprep.mubr.bf16.mxu0 %v1897
        %2067 = vmatmul.mubr.bf16.gmra.mrb[0].mxu0 %v1896
        %v2068 = vpop.f32.mrb[0].mxu0
        %v2069 = vadd.f32 0.0, %v2068
        %v2070 = vpop.f32.mrb[0].mxu0
        %v2071 = vpop.f32.mrb[0].mxu0
        %v2072 = vadd.f32 0.0, %v2071
        %v2073 = vpop.f32.mrb[0].mxu0
        %2074 = vdwg.mxu0
        %2075 = vst [vmem:[%s369] sm:$0xff] %v1771
        %2076 = vst [vmem:[%s369 + $0x8] sm:$0xff] %v1772
        %2077 = vst [vmem:[%s369 + $0x10] sm:$0xff] %v1774
        %2078 = vst [vmem:[%s369 + $0x18] sm:$0xff] %v1775
        %2079 = vst [vmem:[%s369 + $0x20] sm:$0xff] %v1777
        %2080 = vst [vmem:[%s369 + $0x28] sm:$0xff] %v1778
        %2081 = vst [vmem:[%s369 + $0x30] sm:$0xff] %v1780
        %2082 = vst [vmem:[%s369 + $0x38] sm:$0xff] %v1781
        %2083 = vst [vmem:[%s369 + $0x40] sm:$0xff] %v1783
        %2084 = vst [vmem:[%s369 + $0x48] sm:$0xff] %v1784
        %2085 = vst [vmem:[%s369 + $0x50] sm:$0xff] %v1786
        %2086 = vst [vmem:[%s369 + $0x58] sm:$0xff] %v1787
        %2087 = vst [vmem:[%s369 + $0x60] sm:$0xff] %v1789
        %2088 = vst [vmem:[%s369 + $0x68] sm:$0xff] %v1790
        %2089 = vst [vmem:[%s369 + $0x70] sm:$0xff] %v1792
        %2090 = vst [vmem:[%s369 + $0x78] sm:$0xff] %v1793
        %2091 = vst [vmem:[%s369 + $0x80] sm:$0xff] %v1795
        %2092 = vst [vmem:[%s369 + $0x88] sm:$0xff] %v1796
        %2093 = vst [vmem:[%s369 + $0x90] sm:$0xff] %v1798
        %2094 = vst [vmem:[%s369 + $0x98] sm:$0xff] %v1799
        %2095 = vst [vmem:[%s369 + $0xa0] sm:$0xff] %v1801
        %2096 = vst [vmem:[%s369 + $0xa8] sm:$0xff] %v1802
        %2097 = vst [vmem:[%s369 + $0xb0] sm:$0xff] %v1804
        %2098 = vst [vmem:[%s369 + $0xb8] sm:$0xff] %v1805
        %2099 = vst [vmem:[%s369 + $0xc0] sm:$0xff] %v1807
        %2100 = vst [vmem:[%s369 + $0xc8] sm:$0xff] %v1808
        %2101 = vst [vmem:[%s369 + $0xd0] sm:$0xff] %v1810
        %2102 = vst [vmem:[%s369 + $0xd8] sm:$0xff] %v1811
        %2103 = vst [vmem:[%s369 + $0xe0] sm:$0xff] %v1813
        %2104 = vst [vmem:[%s369 + $0xe8] sm:$0xff] %v1814
        %2105 = vst [vmem:[%s369 + $0xf0] sm:$0xff] %v1816
        %2106 = vst [vmem:[%s369 + $0xf8] sm:$0xff] %v1817
        %2107 = vst [vmem:[%s369 + $0x100] sm:$0xff] %v1819
        %2108 = vst [vmem:[%s369 + $0x108] sm:$0xff] %v1820
        %2109 = vst [vmem:[%s369 + $0x110] sm:$0xff] %v1822
        %2110 = vst [vmem:[%s369 + $0x118] sm:$0xff] %v1823
        %2111 = vst [vmem:[%s369 + $0x120] sm:$0xff] %v1825
        %2112 = vst [vmem:[%s369 + $0x128] sm:$0xff] %v1826
        %2113 = vst [vmem:[%s369 + $0x130] sm:$0xff] %v1828
        %2114 = vst [vmem:[%s369 + $0x138] sm:$0xff] %v1829
        %2115 = vst [vmem:[%s369 + $0x140] sm:$0xff] %v1831
        %2116 = vst [vmem:[%s369 + $0x148] sm:$0xff] %v1832
        %2117 = vst [vmem:[%s369 + $0x150] sm:$0xff] %v1834
        %2118 = vst [vmem:[%s369 + $0x158] sm:$0xff] %v1835
        %2119 = vst [vmem:[%s369 + $0x160] sm:$0xff] %v1837
        %2120 = vst [vmem:[%s369 + $0x168] sm:$0xff] %v1838
        %2121 = vst [vmem:[%s369 + $0x170] sm:$0xff] %v1840
        %2122 = vst [vmem:[%s369 + $0x178] sm:$0xff] %v1841
        %2123 = vst [vmem:[%s369 + $0x180] sm:$0xff] %v1843
        %2124 = vst [vmem:[%s369 + $0x188] sm:$0xff] %v1844
        %2125 = vst [vmem:[%s369 + $0x190] sm:$0xff] %v1846
        %2126 = vst [vmem:[%s369 + $0x198] sm:$0xff] %v1847
        %2127 = vst [vmem:[%s369 + $0x1a0] sm:$0xff] %v1849
        %2128 = vst [vmem:[%s369 + $0x1a8] sm:$0xff] %v1850
        %2129 = vst [vmem:[%s369 + $0x1b0] sm:$0xff] %v1852
        %2130 = vst [vmem:[%s369 + $0x1b8] sm:$0xff] %v1853
        %2131 = vst [vmem:[%s369 + $0x1c0] sm:$0xff] %v1855
        %2132 = vst [vmem:[%s369 + $0x1c8] sm:$0xff] %v1856
        %2133 = vst [vmem:[%s369 + $0x1d0] sm:$0xff] %v1858
        %2134 = vst [vmem:[%s369 + $0x1d8] sm:$0xff] %v1859
        %2135 = vst [vmem:[%s369 + $0x1e0] sm:$0xff] %v1861
        %2136 = vst [vmem:[%s369 + $0x1e8] sm:$0xff] %v1862
        %2137 = vst [vmem:[%s369 + $0x1f0] sm:$0xff] %v1864
        %2138 = vst [vmem:[%s369 + $0x1f8] sm:$0xff] %v1865
        %2139 = vst.msk [vmem:[%s429] sm:$0xff] %vm664, %v1949
        %2140 = vst.msk [vmem:[%s429 + $0x8] sm:$0xff] %vm664, %v1952
        %2141 = vst.msk [vmem:[%s429 + $0x10] sm:$0xff] %vm664, %v1957
        %2142 = vst.msk [vmem:[%s429 + $0x18] sm:$0xff] %vm664, %v1960
        %2143 = vst.msk [vmem:[%s429 + $0x20] sm:$0xff] %vm664, %v1965
        %2144 = vst.msk [vmem:[%s429 + $0x28] sm:$0xff] %vm664, %v1968
        %2145 = vst.msk [vmem:[%s429 + $0x30] sm:$0xff] %vm664, %v1973
        %2146 = vst.msk [vmem:[%s429 + $0x38] sm:$0xff] %vm664, %v1976
        %2147 = vst.msk [vmem:[%s429 + $0x40] sm:$0xff] %vm664, %v1981
        %2148 = vst.msk [vmem:[%s429 + $0x48] sm:$0xff] %vm664, %v1984
        %2149 = vst.msk [vmem:[%s429 + $0x50] sm:$0xff] %vm664, %v1989
        %2150 = vst.msk [vmem:[%s429 + $0x58] sm:$0xff] %vm664, %v1992
        %2151 = vst.msk [vmem:[%s429 + $0x60] sm:$0xff] %vm664, %v1997
        %2152 = vst.msk [vmem:[%s429 + $0x68] sm:$0xff] %vm664, %v2000
        %2153 = vst.msk [vmem:[%s429 + $0x70] sm:$0xff] %vm664, %v2005
        %2154 = vst.msk [vmem:[%s429 + $0x78] sm:$0xff] %vm664, %v2008
        %2155 = vst.msk [vmem:[%s429 + $0x80] sm:$0xff] %vm664, %v2013
        %2156 = vst.msk [vmem:[%s429 + $0x88] sm:$0xff] %vm664, %v2016
        %2157 = vst.msk [vmem:[%s429 + $0x90] sm:$0xff] %vm664, %v2021
        %2158 = vst.msk [vmem:[%s429 + $0x98] sm:$0xff] %vm664, %v2024
        %2159 = vst.msk [vmem:[%s429 + $0xa0] sm:$0xff] %vm664, %v2029
        %2160 = vst.msk [vmem:[%s429 + $0xa8] sm:$0xff] %vm664, %v2032
        %2161 = vst.msk [vmem:[%s429 + $0xb0] sm:$0xff] %vm664, %v2037
        %2162 = vst.msk [vmem:[%s429 + $0xb8] sm:$0xff] %vm664, %v2040
        %2163 = vst.msk [vmem:[%s429 + $0xc0] sm:$0xff] %vm664, %v2045
        %2164 = vst.msk [vmem:[%s429 + $0xc8] sm:$0xff] %vm664, %v2048
        %2165 = vst.msk [vmem:[%s429 + $0xd0] sm:$0xff] %vm664, %v2053
        %2166 = vst.msk [vmem:[%s429 + $0xd8] sm:$0xff] %vm664, %v2056
        %2167 = vst.msk [vmem:[%s429 + $0xe0] sm:$0xff] %vm664, %v2061
        %2168 = vst.msk [vmem:[%s429 + $0xe8] sm:$0xff] %vm664, %v2064
        %2169 = vst.msk [vmem:[%s429 + $0xf0] sm:$0xff] %vm664, %v2069
        %2170 = vst.msk [vmem:[%s429 + $0xf8] sm:$0xff] %vm664, %v2072
        %s2171 = smul.u32 32, %s27
        %p2172 = scmp.lt.s32.totalorder %s25, 1
        %s2173 = scalar_select %p2172, %s25, 1
        %p2174 = scmp.lt.s32.totalorder %s26, 3
        %s2175 = scalar_select %p2174, %s26, 3
        %p2176 = scmp.lt.s32.totalorder %s2171, 31
        %s2177 = scalar_select %p2176, %s2171, 31
        %s2178 = smul.addr %s2175, 32
        %s2179 = sadd.s32 %s2177, %s2178
        %s2180 = smul.addr %s2173, 128
        %s2181 = sadd.s32 %s2179, %s2180
        %s2182 = smul.addr %s2181, 8
        %s2183 = scalar_lea.vmem %s4, %s2182
        %s2184 = sand.u32 %s197, 1
        %s2185 = scalar_lea.sflag [#allocation5], %s2184
        %s2186 = sand.u32 %s197, 1
        %s2187 = smul.addr %s2186, 512
        %s2188 = scalar_lea.vmem [#allocation4], %s2187
        // Predicated region
        $region41: #{tpu_custom_call.1} parent=35 // pred_check
          %p2189 = pneg %p177
        $region42: #{tpu_custom_call.1} parent=35 // pred_check_branch
          %2191 = sbr.rel (%p2189) target = $region44
        $region43: #{tpu_custom_call.1} parent=35 // pred_region
          %s2192 = smul.u32 32, %s27
        $region44: #{tpu_custom_call.1} parent=35 // pred_fallthru
          _
        // Predicated region
        $region45: #{tpu_custom_call.1} parent=35 // pred_check
          %p2193 = pneg %p207
        $region46: #{tpu_custom_call.1} parent=35 // pred_check_branch
          %2195 = sbr.rel (%p2193) target = $region48
        $region47: #{tpu_custom_call.1} parent=35 // pred_region
          %s2196 = smul.u32 32, %s27
          %s2198 = ssub.s32 8192, 8192
          %2199 = vsyncadd %s2185, %s2198
          %s2200 = smul.addr %s2196, 2
          %s2201 = smul.addr %s26, 64
          %s2202 = sadd.s32 %s2200, %s2201
          %s2203 = smul.addr %s25, 256
          %s2204 = sadd.s32 %s2202, %s2203
          %s2205 = smul.addr %s2204, 128
          %s2206 = scalar_lea.hbm %s5, %s2205
          %s2207 = sshll.u32 %s2188, 4
          %s2208 = int_to_ptr.vmem [resolvable:$true] %s2207
          %2213 = dma.vmem_to_hbm [thread:$0]  %s2208, 8192, %s2206, %s2185, 256, 256, 16
        $region48: #{tpu_custom_call.1} parent=35 // pred_fallthru
          _
      $region36: #{tpu_custom_call.1} parent=5 // pred_fallthru
        _
      %p2214 = scmp.le.s32.totalorder 2, %s15
      // Predicated region
      $region49: #{tpu_custom_call.1} parent=5 // pred_check
        %p2215 = pneg %p2214
      $region50: #{tpu_custom_call.1} parent=5 // pred_check_branch
        %2217 = sbr.rel (%p2215) target = $region52
      $region51: #{tpu_custom_call.1} parent=5 // pred_region
        %s2218 = ssub.s32 %s15, 2
        // Predicated region
        $region53: #{tpu_custom_call.1} parent=51 // pred_check
          %p2219 = pneg %p183
        $region54: #{tpu_custom_call.1} parent=51 // pred_check_branch
          %2221 = sbr.rel (%p2219) target = $region56
        $region55: #{tpu_custom_call.1} parent=51 // pred_region
          %s2222 = smul.u32 32, %s30
          %p2223 = scmp.lt.s32.totalorder %s28, 1
          %s2224 = scalar_select %p2223, %s28, 1
          %p2225 = scmp.lt.s32.totalorder %s29, 3
          %s2226 = scalar_select %p2225, %s29, 3
          %p2227 = scmp.lt.s32.totalorder %s2222, 31
          %s2228 = scalar_select %p2227, %s2222, 31
          %s2229 = smul.addr %s2226, 32
          %s2230 = sadd.s32 %s2228, %s2229
          %s2231 = smul.addr %s2224, 128
          %s2232 = sadd.s32 %s2230, %s2231
          %s2233 = smul.addr %s2232, 8
          %s2234 = scalar_lea.vmem %s4, %s2233
        $region56: #{tpu_custom_call.1} parent=51 // pred_fallthru
          _
        // Predicated region
        $region57: #{tpu_custom_call.1} parent=51 // pred_check
          %p2235 = pneg %p213
        $region58: #{tpu_custom_call.1} parent=51 // pred_check_branch
          %2237 = sbr.rel (%p2235) target = $region60
        $region59: #{tpu_custom_call.1} parent=51 // pred_region
          %s2238 = sand.u32 %s198, 1
          %s2239 = scalar_lea.sflag [#allocation5], %s2238
          %s2240 = sand.u32 %s198, 1
          %s2241 = smul.addr %s2240, 512
          %s2242 = scalar_lea.vmem [#allocation4], %s2241
          %2243 = dma.done %s2239, 8192
        $region60: #{tpu_custom_call.1} parent=51 // pred_fallthru
          _
      $region52: #{tpu_custom_call.1} parent=5 // pred_fallthru
        _
    $region6: #{tpu_custom_call.1} parent=1 // loop_footer
      %s19 = sadd.s32 1, %s15
    $region7: #{tpu_custom_call.1} parent=1 // loop_footer_branch
      %14 = sbr.rel target = $region3
    $region8: #{tpu_custom_call.1} parent=1 // loop_exit
      _
    %2244 = vsyncpa [#allocation5], 1
    %s2245 = scalar_lea.sflag [#allocation5], 1
    %2246 = vsyncpa %s2245, 1

</llo_original>
